<compile_context>
chip_gen: v7x
topology: tpu7x:2x2x1
jax: 0.10.0
libtpu: 0.0.40
codegen_flags: <defaults>
</compile_context>

<pallas_src>
import jax
import jax.numpy as jnp
from jax import lax
import numpy as np
from jax.experimental import pallas as pl
from jax.experimental.pallas import tpu as pltpu


# ----------------------------------------------------------------------------
# Pallas kernels
# ----------------------------------------------------------------------------
def _matmul_stats_kernel(w_ref, x_ref, y_ref, s_ref):
    """One conv column-block: Y = W @ X plus per-row partial BN statistics.

    w_ref: (R, KC)      weight matrix (rows = output rows, cols = taps*Cin)
    x_ref: (KC, TB)     im2col'd activations, lane-dense columns
    y_ref: (R, TB)      conv output block (lane-dense)
    s_ref: (1, R, 2)    per-row partial [sum, sum-of-squares] for this block
    """
    y = jnp.dot(w_ref[...], x_ref[...], preferred_element_type=jnp.float32)
    y_ref[...] = y
    sums = jnp.sum(y, axis=1, keepdims=True)        # (R, 1)
    sqs = jnp.sum(y * y, axis=1, keepdims=True)     # (R, 1)
    s_ref[...] = jnp.concatenate([sums, sqs], axis=1)[None]   # (1, R, 2)


def _bn_act_kernel(x_ref, scale_ref, shift_ref, alpha_ref, o_ref):
    """Fused BN-apply (precomputed per-channel scale/shift) + PReLU.

    x_ref: (C, TB) lane-dense block; scale/shift: (C, 1); alpha: (1, 1).
    """
    t = x_ref[...] * scale_ref[...] + shift_ref[...]
    a = alpha_ref[0, 0]
    o_ref[...] = jnp.where(t > 0, t, a * t)


def _bn_act_add_kernel(x_ref, r_ref, scale_ref, shift_ref, alpha_ref, o_ref):
    """Same as above plus residual add (identity shortcut of the ResidualUnit)."""
    t = x_ref[...] * scale_ref[...] + shift_ref[...]
    a = alpha_ref[0, 0]
    o_ref[...] = jnp.where(t > 0, t, a * t) + r_ref[...]


# ----------------------------------------------------------------------------
# pallas_call wrappers
# ----------------------------------------------------------------------------
def _pick_col_block(nm, cap=512):
    """Pick a lane-dense column block (multiple of 128 that divides nm)."""
    if nm % 128 != 0:
        return nm, 1                      # single full-width block (always legal)
    tb = min(cap, nm)
    while nm % tb != 0:
        tb -= 128
    return tb, nm // tb


def matmul_stats(w_mat, x_mat, *, block_cols=512):
    """Conv as one matmul per column block + partial BN stats in the epilogue."""
    R, KC = w_mat.shape
    KC2, NM = x_mat.shape
    assert KC == KC2
    TB, nb = _pick_col_block(NM, block_cols)
    y, s = pl.pallas_call(
        _matmul_stats_kernel,
        out_shape=(jax.ShapeDtypeStruct((R, NM), jnp.float32),
                   jax.ShapeDtypeStruct((nb, R, 2), jnp.float32)),
        grid=(nb,),
        in_specs=[
            pl.BlockSpec((R, KC), lambda b: (0, 0)),     # weights stay resident
            pl.BlockSpec((KC, TB), lambda b: (0, b)),
        ],
        out_specs=(
            pl.BlockSpec((R, TB), lambda b: (0, b)),
            pl.BlockSpec((1, R, 2), lambda b: (b, 0, 0)),
        ),
        compiler_params=pltpu.CompilerParams(dimension_semantics=("parallel",)),
    )(w_mat.astype(jnp.float32), x_mat.astype(jnp.float32))
    return y, s


def bn_prelu_apply(x_mat, scale, shift, alpha, residual=None, *, block_cols=512):
    """Tiled, lane-dense BN-apply + PReLU (+ residual).  x_mat: (C, N*spatial)."""
    C, NM = x_mat.shape
    TB, nb = _pick_col_block(NM, block_cols)
    sc = scale.reshape(C, 1).astype(jnp.float32)
    sh = shift.reshape(C, 1).astype(jnp.float32)
    al = jnp.full((1, 1), alpha, jnp.float32)

    col = pl.BlockSpec((C, TB), lambda b: (0, b))
    vec = pl.BlockSpec((C, 1), lambda b: (0, 0))
    one = pl.BlockSpec((1, 1), lambda b: (0, 0))

    if residual is None:
        kernel, ins, in_specs = _bn_act_kernel, (x_mat, sc, sh, al), [col, vec, vec, one]
    else:
        kernel, ins, in_specs = (_bn_act_add_kernel, (x_mat, residual, sc, sh, al),
                                 [col, col, vec, vec, one])

    return pl.pallas_call(
        kernel,
        out_shape=jax.ShapeDtypeStruct((C, NM), jnp.float32),
        grid=(nb,),
        in_specs=in_specs,
        out_specs=pl.BlockSpec((C, TB), lambda b: (0, b)),
        compiler_params=pltpu.CompilerParams(dimension_semantics=("parallel",)),
    )(*ins)


# ----------------------------------------------------------------------------
# Wrapper-side layout plumbing (XLA): phase weights, im2col, stats finalize
# ----------------------------------------------------------------------------
K = 3           # kernel_size
S = 2           # strides
P = (K - 1) // 2            # MONAI same_padding -> 1
OP = S - 1                  # MONAI output_padding -> 1


def _upsample_phase_weight(w_up):
    """ConvTranspose3d(k=3, s=2, p=1, op=1) as 8 parity phases of the output.

    1-D derivation: out[2m] = x[m]*w[1]; out[2m+1] = x[m]*w[2] + x[m+1]*w[0]
    (x padded by one zero at the end).  sel[p, s, k] selects which kernel tap k
    multiplies the input shifted by s for output parity p.
    Returns W of shape (8*Cout, 8*Cin): rows = (pd,ph,pw,cout), cols = (sd,sh,sw,cin).
    """
    Cin, Cout = w_up.shape[0], w_up.shape[1]
    sel = np.zeros((2, 2, 3), np.float32)
    sel[0, 0, 1] = 1.0      # even parity: shift 0 uses k=1
    sel[1, 0, 2] = 1.0      # odd parity:  shift 0 uses k=2
    sel[1, 1, 0] = 1.0      # odd parity:  shift 1 uses k=0
    sel = jnp.asarray(sel)
    w8 = jnp.einsum('PSa,QTb,RUc,ioabc->PQRoSTUi', sel, sel, sel,
                    w_up.astype(jnp.float32))
    return w8.reshape(8 * Cout, 8 * Cin)


def _im2col(x_pad, taps_per_dim, D, H, W):
    """x_pad: (N, C, Dp, Hp, Wp) -> (taps^3 * C, N*D*H*W), columns = (n,d,h,w)."""
    N, C = x_pad.shape[0], x_pad.shape[1]
    cols = [x_pad[:, :, kd:kd + D, kh:kh + H, kw:kw + W]
            for kd in range(taps_per_dim)
            for kh in range(taps_per_dim)
            for kw in range(taps_per_dim)]
    xt = jnp.stack(cols, 0).transpose(0, 2, 1, 3, 4, 5)
    return xt.reshape(taps_per_dim ** 3 * C, N * D * H * W)


def _finalize_bn(stats, groups, count, gamma, beta, eps=1e-5):
    """Partial (nb, groups*C, 2) stats -> per-channel (scale, shift)."""
    C = gamma.shape[0]
    s = stats.reshape(stats.shape[0], groups, C, 2).sum(axis=(0, 1))   # (C, 2)
    mean = s[:, 0] / count
    var = jnp.maximum(s[:, 1] / count - mean * mean, 0.0)
    scale = gamma.astype(jnp.float32) * lax.rsqrt(var + eps)
    shift = beta.astype(jnp.float32) - mean * scale
    return scale, shift


# ----------------------------------------------------------------------------
# UpLayer forward (NCDHW in / NCDHW out, matching PyTorch semantics)
# ----------------------------------------------------------------------------
def up_layer_forward(x_ncdhw, p):
    x = x_ncdhw.astype(jnp.float32)
    N, Cin, D, H, W = x.shape
    Cout = p["w_up"].shape[1]
    Do, Ho, Wo = S * D, S * H, S * W
    count = N * Do * Ho * Wo

    # --- upsample: ConvTranspose3d via phase decomposition, one MXU matmul ---
    # Conv bias dropped: the following training-mode BatchNorm subtracts the
    # batch mean, which cancels a per-channel bias exactly.
    xp = jnp.pad(x, ((0, 0), (0, 0), (0, 1), (0, 1), (0, 1)))
    xt_up = _im2col(xp, 2, D, H, W)                         # (8*Cin, N*D*H*W)
    w_up_mat = _upsample_phase_weight(p["w_up"])            # (8*Cout, 8*Cin)
    y_ph, st1 = matmul_stats(w_up_mat, xt_up)               # rows = (phase, cout)
    scale1, shift1 = _finalize_bn(st1, 8, count, p["gamma1"], p["beta1"])

    # De-interleave the 8 phases into the true output volume (layout plumbing).
    y_pre = y_ph.reshape(2, 2, 2, Cout, N, D, H, W)
    y_pre = y_pre.transpose(4, 3, 5, 0, 6, 1, 7, 2).reshape(N, Cout, Do, Ho, Wo)
    y_flat = y_pre.transpose(1, 0, 2, 3, 4).reshape(Cout, count)

    # ADN 'NDA': BatchNorm -> Dropout(p=0, identity) -> PReLU (fused apply).
    y_act = bn_prelu_apply(y_flat, scale1, shift1, p["alpha1"])

    # --- ResidualUnit (1 subunit): Conv3d(k=3,s=1,p=1) -> BN -> PReLU, + id ---
    y_vol = y_act.reshape(Cout, N, Do, Ho, Wo).transpose(1, 0, 2, 3, 4)
    ypad = jnp.pad(y_vol, ((0, 0), (0, 0), (1, 1), (1, 1), (1, 1)))
    xt_res = _im2col(ypad, 3, Do, Ho, Wo)                   # (27*Cout, count)
    w_res_mat = jnp.transpose(p["w_res"], (0, 2, 3, 4, 1)).reshape(Cout, 27 * Cout)
    z, st2 = matmul_stats(w_res_mat, xt_res)
    scale2, shift2 = _finalize_bn(st2, 1, count, p["gamma2"], p["beta2"])

    out_flat = bn_prelu_apply(z, scale2, shift2, p["alpha2"], residual=y_act)
    return out_flat.reshape(Cout, N, Do, Ho, Wo).transpose(1, 0, 2, 3, 4)


# ----------------------------------------------------------------------------
# Pure-JAX reference (lax convolutions, biases kept) for correctness checking
# ----------------------------------------------------------------------------
def _ref_bn_prelu(x, gamma, beta, alpha):
    mean = jnp.mean(x, axis=(0, 1, 2, 3), keepdims=True)
    var = jnp.mean(jnp.square(x - mean), axis=(0, 1, 2, 3), keepdims=True)
    y = (x - mean) * lax.rsqrt(var + 1e-5) * gamma + beta
    return jnp.where(y > 0, y, alpha * y)


def reference(x_ncdhw, p):
    x = jnp.transpose(x_ncdhw, (0, 2, 3, 4, 1)).astype(jnp.float32)
    dn = ("NDHWC", "DHWIO", "NDHWC")
    w_up_conv = jnp.transpose(jnp.flip(p["w_up"], axis=(2, 3, 4)), (2, 3, 4, 0, 1))
    y = lax.conv_general_dilated(x, w_up_conv, (1, 1, 1),
                                 [(K - 1 - P, K - 1 - P + OP)] * 3,
                                 lhs_dilation=(S, S, S), dimension_numbers=dn)
    y = y + p["b_up"].reshape(1, 1, 1, 1, -1)
    y = _ref_bn_prelu(y, p["gamma1"], p["beta1"], p["alpha1"])

    w_res_conv = jnp.transpose(p["w_res"], (2, 3, 4, 1, 0))
    z = lax.conv_general_dilated(y, w_res_conv, (1, 1, 1), [(1, 1)] * 3,
                                 dimension_numbers=dn)
    z = z + p["b_res"].reshape(1, 1, 1, 1, -1)
    out = _ref_bn_prelu(z, p["gamma2"], p["beta2"], p["alpha2"]) + y
    return jnp.transpose(out, (0, 4, 1, 2, 3))


# ----------------------------------------------------------------------------
if __name__ == "__main__":
    key = jax.random.PRNGKey(0)
    ks = jax.random.split(key, 10)

    N, CIN, COUT, D = 2, 8, 4, 4     # input spatial 4^3 -> output spatial 8^3

    x = jax.random.normal(ks[0], (N, CIN, D, D, D), jnp.float32)

    params = dict(
        # ConvTranspose3d(in=CIN, out=COUT, k=3): weight (CIN, COUT, 3,3,3), bias (COUT,)
        w_up=0.2 * jax.random.normal(ks[1], (CIN, COUT, K, K, K), jnp.float32),
        b_up=0.1 * jax.random.normal(ks[2], (COUT,), jnp.float32),
        gamma1=1.0 + 0.1 * jax.random.normal(ks[3], (COUT,), jnp.float32),
        beta1=0.1 * jax.random.normal(ks[4], (COUT,), jnp.float32),
        alpha1=jnp.float32(0.25),
        # Conv3d(COUT, COUT, k=3): weight (COUT, COUT, 3,3,3), bias (COUT,)
        w_res=0.2 * jax.random.normal(ks[5], (COUT, COUT, K, K, K), jnp.float32),
        b_res=0.1 * jax.random.normal(ks[6], (COUT,), jnp.float32),
        gamma2=1.0 + 0.1 * jax.random.normal(ks[7], (COUT,), jnp.float32),
        beta2=0.1 * jax.random.normal(ks[8], (COUT,), jnp.float32),
        alpha2=jnp.float32(0.25),
    )

    fwd = jax.jit(up_layer_forward)
    out = jax.block_until_ready(fwd(x, params))
    ref = jax.block_until_ready(reference(x, params))

    assert out.shape == (N, COUT, 2 * D, 2 * D, 2 * D), out.shape
    np.testing.assert_allclose(np.asarray(out), np.asarray(ref), rtol=2e-3, atol=2e-3)

    # TODO(synk): BatchNorm running-stat buffer updates (training bookkeeping) are
    # not replicated; normalization uses batch statistics as in PyTorch train mode.
    print("KERNEL_OK")
</pallas_src>

<mosaic_0001>
module attributes {stable_mosaic.version = 11 : i64} {
  func.func @_matmul_stats_kernel(%arg0: i32, %arg1: memref<32x64xf32, #tpu.memory_space<vmem>>, %arg2: memref<64x128xf32, #tpu.memory_space<vmem>>, %arg3: memref<32x128xf32, #tpu.memory_space<vmem>>, %arg4: memref<1x32x2xf32, #tpu.memory_space<vmem>>) attributes {dimension_semantics = [#tpu.dimension_semantics<parallel>], iteration_bounds = array<i64: 1>, scalar_prefetch = 0 : i64, scratch_operands = 0 : i64, tpu.core_type = #tpu.core_type<tc>, window_params = [{pipeline_mode = #tpu.pipeline_mode<synchronous>, transform_indices = @transform_0, window_bounds = array<i64: 32, 64>}, {transform_indices = @transform_1, window_bounds = array<i64: 64, 128>}, {transform_indices = @transform_2, window_bounds = array<i64: 32, 128>}, {transform_indices = @transform_3, window_bounds = array<i64: 1, 32, 2>}]} {
    %c0 = arith.constant 0 : index
    %c0_0 = arith.constant 0 : index
    %0 = vector.load %arg1[%c0, %c0_0] : memref<32x64xf32, #tpu.memory_space<vmem>>, vector<32x64xf32>
    %c0_1 = arith.constant 0 : index
    %c0_2 = arith.constant 0 : index
    %1 = vector.load %arg2[%c0_1, %c0_2] : memref<64x128xf32, #tpu.memory_space<vmem>>, vector<64x128xf32>
    %cst = arith.constant dense<0.000000e+00> : vector<32x128xf32>
    %2 = tpu.matmul %0, %1, %cst {dimension_numbers = #tpu.dot_dimension_numbers<[1], [0], [0], [1], [0, 0, 1, 1], [], []>} : vector<32x64xf32>, vector<64x128xf32>, vector<32x128xf32> -> vector<32x128xf32>
    %c0_3 = arith.constant 0 : index
    %c0_4 = arith.constant 0 : index
    %3 = vector.load %arg3[%c0_3, %c0_4] : memref<32x128xf32, #tpu.memory_space<vmem>>, vector<32x128xf32>
    tpu.vector_store %arg3[%c0_3, %c0_4], %2 {strides = array<i32>} : memref<32x128xf32, #tpu.memory_space<vmem>>, vector<32x128xf32>,
    %cst_5 = arith.constant dense<0.000000e+00> : vector<32xf32>
    %4 = vector.multi_reduction <add>, %2, %cst_5 [1] : vector<32x128xf32> to vector<32xf32>
    %5 = vector.shape_cast %4 : vector<32xf32> to vector<32x1xf32>
    %6 = arith.mulf %2, %2 : vector<32x128xf32>
    %cst_6 = arith.constant dense<0.000000e+00> : vector<32xf32>
    %7 = vector.multi_reduction <add>, %6, %cst_6 [1] : vector<32x128xf32> to vector<32xf32>
    %8 = vector.shape_cast %7 : vector<32xf32> to vector<32x1xf32>
    %9 = tpu.concatenate %5, %8 in 1 : vector<32x1xf32>, vector<32x1xf32> -> vector<32x2xf32>
    %10 = vector.shape_cast %9 : vector<32x2xf32> to vector<1x32x2xf32>
    %c0_7 = arith.constant 0 : index
    %c0_8 = arith.constant 0 : index
    %c0_9 = arith.constant 0 : index
    %11 = vector.load %arg4[%c0_7, %c0_8, %c0_9] : memref<1x32x2xf32, #tpu.memory_space<vmem>>, vector<1x32x2xf32>
    tpu.vector_store %arg4[%c0_7, %c0_8, %c0_9], %10 {strides = array<i32>} : memref<1x32x2xf32, #tpu.memory_space<vmem>>, vector<1x32x2xf32>,
    return
  }
  func.func @transform_0(%arg0: i32) -> (i32, i32) {
    %c0_i32 = arith.constant 0 : i32
    %c0_i32_0 = arith.constant 0 : i32
    %c0_i32_1 = arith.constant 0 : i32
    return %c0_i32, %c0_i32_0 : i32, i32
  }
  func.func @transform_1(%arg0: i32) -> (i32, i32) {
    %c0_i32 = arith.constant 0 : i32
    %c0_i32_0 = arith.constant 0 : i32
    return %c0_i32, %arg0 : i32, i32
  }
  func.func @transform_2(%arg0: i32) -> (i32, i32) {
    %c0_i32 = arith.constant 0 : i32
    %c0_i32_0 = arith.constant 0 : i32
    return %c0_i32, %arg0 : i32, i32
  }
  func.func @transform_3(%arg0: i32) -> (i32, i32, i32) {
    %c0_i32 = arith.constant 0 : i32
    %c0_i32_0 = arith.constant 0 : i32
    %c0_i32_1 = arith.constant 0 : i32
    return %arg0, %c0_i32, %c0_i32_0 : i32, i32, i32
  }
}

module attributes {stable_mosaic.version = 11 : i64} {
  func.func @_bn_act_kernel(%arg0: i32, %arg1: memref<4x512xf32, #tpu.memory_space<vmem>>, %arg2: memref<4x1xf32, #tpu.memory_space<vmem>>, %arg3: memref<4x1xf32, #tpu.memory_space<vmem>>, %arg4: memref<1x1xf32, #tpu.memory_space<vmem>>, %arg5: memref<4x512xf32, #tpu.memory_space<vmem>>) attributes {dimension_semantics = [#tpu.dimension_semantics<parallel>], iteration_bounds = array<i64: 2>, scalar_prefetch = 0 : i64, scratch_operands = 0 : i64, tpu.core_type = #tpu.core_type<tc>, window_params = [{transform_indices = @transform_0, window_bounds = array<i64: 4, 512>}, {pipeline_mode = #tpu.pipeline_mode<synchronous>, transform_indices = @transform_1, window_bounds = array<i64: 4, 1>}, {pipeline_mode = #tpu.pipeline_mode<synchronous>, transform_indices = @transform_2, window_bounds = array<i64: 4, 1>}, {pipeline_mode = #tpu.pipeline_mode<synchronous>, transform_indices = @transform_3, window_bounds = array<i64: 1, 1>}, {transform_indices = @transform_4, window_bounds = array<i64: 4, 512>}]} {
    %c0 = arith.constant 0 : index
    %c0_0 = arith.constant 0 : index
    %0 = vector.load %arg1[%c0, %c0_0] : memref<4x512xf32, #tpu.memory_space<vmem>>, vector<4x512xf32>
    %c0_1 = arith.constant 0 : index
    %c0_2 = arith.constant 0 : index
    %1 = vector.load %arg2[%c0_1, %c0_2] : memref<4x1xf32, #tpu.memory_space<vmem>>, vector<4x1xf32>
    %2 = vector.broadcast %1 : vector<4x1xf32> to vector<4x512xf32>
    %3 = arith.mulf %0, %2 : vector<4x512xf32>
    %c0_3 = arith.constant 0 : index
    %c0_4 = arith.constant 0 : index
    %4 = vector.load %arg3[%c0_3, %c0_4] : memref<4x1xf32, #tpu.memory_space<vmem>>, vector<4x1xf32>
    %5 = vector.broadcast %4 : vector<4x1xf32> to vector<4x512xf32>
    %6 = arith.addf %3, %5 : vector<4x512xf32>
    %c0_5 = arith.constant 0 : index
    %c0_6 = arith.constant 0 : index
    %7 = vector.load %arg4[%c0_5, %c0_6] : memref<1x1xf32, #tpu.memory_space<vmem>>, vector<1x1xf32>
    %8 = vector.extract %7[0, 0] : f32 from vector<1x1xf32>
    %cst = arith.constant 0.000000e+00 : f32
    %9 = vector.broadcast %cst : f32 to vector<4x512xf32>
    %10 = arith.cmpf ogt, %6, %9 : vector<4x512xf32>
    %11 = vector.broadcast %8 : f32 to vector<4x512xf32>
    %12 = arith.mulf %11, %6 : vector<4x512xf32>
    %13 = arith.select %10, %6, %12 : vector<4x512xi1>, vector<4x512xf32>
    %c0_7 = arith.constant 0 : index
    %c0_8 = arith.constant 0 : index
    %14 = vector.load %arg5[%c0_7, %c0_8] : memref<4x512xf32, #tpu.memory_space<vmem>>, vector<4x512xf32>
    tpu.vector_store %arg5[%c0_7, %c0_8], %13 {strides = array<i32>} : memref<4x512xf32, #tpu.memory_space<vmem>>, vector<4x512xf32>,
    return
  }
  func.func @transform_0(%arg0: i32) -> (i32, i32) {
    %c0_i32 = arith.constant 0 : i32
    %c0_i32_0 = arith.constant 0 : i32
    return %c0_i32, %arg0 : i32, i32
  }
  func.func @transform_1(%arg0: i32) -> (i32, i32) {
    %c0_i32 = arith.constant 0 : i32
    %c0_i32_0 = arith.constant 0 : i32
    %c0_i32_1 = arith.constant 0 : i32
    return %c0_i32, %c0_i32_0 : i32, i32
  }
  func.func @transform_2(%arg0: i32) -> (i32, i32) {
    %c0_i32 = arith.constant 0 : i32
    %c0_i32_0 = arith.constant 0 : i32
    %c0_i32_1 = arith.constant 0 : i32
    return %c0_i32, %c0_i32_0 : i32, i32
  }
  func.func @transform_3(%arg0: i32) -> (i32, i32) {
    %c0_i32 = arith.constant 0 : i32
    %c0_i32_0 = arith.constant 0 : i32
    %c0_i32_1 = arith.constant 0 : i32
    return %c0_i32, %c0_i32_0 : i32, i32
  }
  func.func @transform_4(%arg0: i32) -> (i32, i32) {
    %c0_i32 = arith.constant 0 : i32
    %c0_i32_0 = arith.constant 0 : i32
    return %c0_i32, %arg0 : i32, i32
  }
}

module attributes {stable_mosaic.version = 11 : i64} {
  func.func @_matmul_stats_kernel(%arg0: i32, %arg1: memref<4x108xf32, #tpu.memory_space<vmem>>, %arg2: memref<108x512xf32, #tpu.memory_space<vmem>>, %arg3: memref<4x512xf32, #tpu.memory_space<vmem>>, %arg4: memref<1x4x2xf32, #tpu.memory_space<vmem>>) attributes {dimension_semantics = [#tpu.dimension_semantics<parallel>], iteration_bounds = array<i64: 2>, scalar_prefetch = 0 : i64, scratch_operands = 0 : i64, tpu.core_type = #tpu.core_type<tc>, window_params = [{pipeline_mode = #tpu.pipeline_mode<synchronous>, transform_indices = @transform_0, window_bounds = array<i64: 4, 108>}, {transform_indices = @transform_1, window_bounds = array<i64: 108, 512>}, {transform_indices = @transform_2, window_bounds = array<i64: 4, 512>}, {transform_indices = @transform_3, window_bounds = array<i64: 1, 4, 2>}]} {
    %c0 = arith.constant 0 : index
    %c0_0 = arith.constant 0 : index
    %0 = vector.load %arg1[%c0, %c0_0] : memref<4x108xf32, #tpu.memory_space<vmem>>, vector<4x108xf32>
    %c0_1 = arith.constant 0 : index
    %c0_2 = arith.constant 0 : index
    %1 = vector.load %arg2[%c0_1, %c0_2] : memref<108x512xf32, #tpu.memory_space<vmem>>, vector<108x512xf32>
    %cst = arith.constant dense<0.000000e+00> : vector<4x512xf32>
    %2 = tpu.matmul %0, %1, %cst {dimension_numbers = #tpu.dot_dimension_numbers<[1], [0], [0], [1], [0, 0, 1, 1], [], []>} : vector<4x108xf32>, vector<108x512xf32>, vector<4x512xf32> -> vector<4x512xf32>
    %c0_3 = arith.constant 0 : index
    %c0_4 = arith.constant 0 : index
    %3 = vector.load %arg3[%c0_3, %c0_4] : memref<4x512xf32, #tpu.memory_space<vmem>>, vector<4x512xf32>
    tpu.vector_store %arg3[%c0_3, %c0_4], %2 {strides = array<i32>} : memref<4x512xf32, #tpu.memory_space<vmem>>, vector<4x512xf32>,
    %cst_5 = arith.constant dense<0.000000e+00> : vector<4xf32>
    %4 = vector.multi_reduction <add>, %2, %cst_5 [1] : vector<4x512xf32> to vector<4xf32>
    %5 = vector.shape_cast %4 : vector<4xf32> to vector<4x1xf32>
    %6 = arith.mulf %2, %2 : vector<4x512xf32>
    %cst_6 = arith.constant dense<0.000000e+00> : vector<4xf32>
    %7 = vector.multi_reduction <add>, %6, %cst_6 [1] : vector<4x512xf32> to vector<4xf32>
    %8 = vector.shape_cast %7 : vector<4xf32> to vector<4x1xf32>
    %9 = tpu.concatenate %5, %8 in 1 : vector<4x1xf32>, vector<4x1xf32> -> vector<4x2xf32>
    %10 = vector.shape_cast %9 : vector<4x2xf32> to vector<1x4x2xf32>
    %c0_7 = arith.constant 0 : index
    %c0_8 = arith.constant 0 : index
    %c0_9 = arith.constant 0 : index
    %11 = vector.load %arg4[%c0_7, %c0_8, %c0_9] : memref<1x4x2xf32, #tpu.memory_space<vmem>>, vector<1x4x2xf32>
    tpu.vector_store %arg4[%c0_7, %c0_8, %c0_9], %10 {strides = array<i32>} : memref<1x4x2xf32, #tpu.memory_space<vmem>>, vector<1x4x2xf32>,
    return
  }
  func.func @transform_0(%arg0: i32) -> (i32, i32) {
    %c0_i32 = arith.constant 0 : i32
    %c0_i32_0 = arith.constant 0 : i32
    %c0_i32_1 = arith.constant 0 : i32
    return %c0_i32, %c0_i32_0 : i32, i32
  }
  func.func @transform_1(%arg0: i32) -> (i32, i32) {
    %c0_i32 = arith.constant 0 : i32
    %c0_i32_0 = arith.constant 0 : i32
    return %c0_i32, %arg0 : i32, i32
  }
  func.func @transform_2(%arg0: i32) -> (i32, i32) {
    %c0_i32 = arith.constant 0 : i32
    %c0_i32_0 = arith.constant 0 : i32
    return %c0_i32, %arg0 : i32, i32
  }
  func.func @transform_3(%arg0: i32) -> (i32, i32, i32) {
    %c0_i32 = arith.constant 0 : i32
    %c0_i32_0 = arith.constant 0 : i32
    %c0_i32_1 = arith.constant 0 : i32
    return %arg0, %c0_i32, %c0_i32_0 : i32, i32, i32
  }
}

module attributes {stable_mosaic.version = 11 : i64} {
  func.func @_bn_act_add_kernel(%arg0: i32, %arg1: memref<4x512xf32, #tpu.memory_space<vmem>>, %arg2: memref<4x512xf32, #tpu.memory_space<vmem>>, %arg3: memref<4x1xf32, #tpu.memory_space<vmem>>, %arg4: memref<4x1xf32, #tpu.memory_space<vmem>>, %arg5: memref<1x1xf32, #tpu.memory_space<vmem>>, %arg6: memref<4x512xf32, #tpu.memory_space<vmem>>) attributes {dimension_semantics = [#tpu.dimension_semantics<parallel>], iteration_bounds = array<i64: 2>, scalar_prefetch = 0 : i64, scratch_operands = 0 : i64, tpu.core_type = #tpu.core_type<tc>, window_params = [{transform_indices = @transform_0, window_bounds = array<i64: 4, 512>}, {transform_indices = @transform_1, window_bounds = array<i64: 4, 512>}, {pipeline_mode = #tpu.pipeline_mode<synchronous>, transform_indices = @transform_2, window_bounds = array<i64: 4, 1>}, {pipeline_mode = #tpu.pipeline_mode<synchronous>, transform_indices = @transform_3, window_bounds = array<i64: 4, 1>}, {pipeline_mode = #tpu.pipeline_mode<synchronous>, transform_indices = @transform_4, window_bounds = array<i64: 1, 1>}, {transform_indices = @transform_5, window_bounds = array<i64: 4, 512>}]} {
    %c0 = arith.constant 0 : index
    %c0_0 = arith.constant 0 : index
    %0 = vector.load %arg1[%c0, %c0_0] : memref<4x512xf32, #tpu.memory_space<vmem>>, vector<4x512xf32>
    %c0_1 = arith.constant 0 : index
    %c0_2 = arith.constant 0 : index
    %1 = vector.load %arg3[%c0_1, %c0_2] : memref<4x1xf32, #tpu.memory_space<vmem>>, vector<4x1xf32>
    %2 = vector.broadcast %1 : vector<4x1xf32> to vector<4x512xf32>
    %3 = arith.mulf %0, %2 : vector<4x512xf32>
    %c0_3 = arith.constant 0 : index
    %c0_4 = arith.constant 0 : index
    %4 = vector.load %arg4[%c0_3, %c0_4] : memref<4x1xf32, #tpu.memory_space<vmem>>, vector<4x1xf32>
    %5 = vector.broadcast %4 : vector<4x1xf32> to vector<4x512xf32>
    %6 = arith.addf %3, %5 : vector<4x512xf32>
    %c0_5 = arith.constant 0 : index
    %c0_6 = arith.constant 0 : index
    %7 = vector.load %arg5[%c0_5, %c0_6] : memref<1x1xf32, #tpu.memory_space<vmem>>, vector<1x1xf32>
    %8 = vector.extract %7[0, 0] : f32 from vector<1x1xf32>
    %cst = arith.constant 0.000000e+00 : f32
    %9 = vector.broadcast %cst : f32 to vector<4x512xf32>
    %10 = arith.cmpf ogt, %6, %9 : vector<4x512xf32>
    %11 = vector.broadcast %8 : f32 to vector<4x512xf32>
    %12 = arith.mulf %11, %6 : vector<4x512xf32>
    %13 = arith.select %10, %6, %12 : vector<4x512xi1>, vector<4x512xf32>
    %c0_7 = arith.constant 0 : index
    %c0_8 = arith.constant 0 : index
    %14 = vector.load %arg2[%c0_7, %c0_8] : memref<4x512xf32, #tpu.memory_space<vmem>>, vector<4x512xf32>
    %15 = arith.addf %13, %14 : vector<4x512xf32>
    %c0_9 = arith.constant 0 : index
    %c0_10 = arith.constant 0 : index
    %16 = vector.load %arg6[%c0_9, %c0_10] : memref<4x512xf32, #tpu.memory_space<vmem>>, vector<4x512xf32>
    tpu.vector_store %arg6[%c0_9, %c0_10], %15 {strides = array<i32>} : memref<4x512xf32, #tpu.memory_space<vmem>>, vector<4x512xf32>,
    return
  }
  func.func @transform_0(%arg0: i32) -> (i32, i32) {
    %c0_i32 = arith.constant 0 : i32
    %c0_i32_0 = arith.constant 0 : i32
    return %c0_i32, %arg0 : i32, i32
  }
  func.func @transform_1(%arg0: i32) -> (i32, i32) {
    %c0_i32 = arith.constant 0 : i32
    %c0_i32_0 = arith.constant 0 : i32
    return %c0_i32, %arg0 : i32, i32
  }
  func.func @transform_2(%arg0: i32) -> (i32, i32) {
    %c0_i32 = arith.constant 0 : i32
    %c0_i32_0 = arith.constant 0 : i32
    %c0_i32_1 = arith.constant 0 : i32
    return %c0_i32, %c0_i32_0 : i32, i32
  }
  func.func @transform_3(%arg0: i32) -> (i32, i32) {
    %c0_i32 = arith.constant 0 : i32
    %c0_i32_0 = arith.constant 0 : i32
    %c0_i32_1 = arith.constant 0 : i32
    return %c0_i32, %c0_i32_0 : i32, i32
  }
  func.func @transform_4(%arg0: i32) -> (i32, i32) {
    %c0_i32 = arith.constant 0 : i32
    %c0_i32_0 = arith.constant 0 : i32
    %c0_i32_1 = arith.constant 0 : i32
    return %c0_i32, %c0_i32_0 : i32, i32
  }
  func.func @transform_5(%arg0: i32) -> (i32, i32) {
    %c0_i32 = arith.constant 0 : i32
    %c0_i32_0 = arith.constant 0 : i32
    return %c0_i32, %arg0 : i32, i32
  }
}

</mosaic_0001>

<llo_original>
// kernel: up_layer_forward.4
$region0: #{up_layer_forward.4}
  #allocation0 [shape = 'u32[]', space=smem, size = 0x4, offset = 0x4, fixed_abs, tag = 'smem constant byte address 0x4 - core index']
  #allocation1 [shape = 'u32[144,128]{1,0:T(1,128)}', space=vmem, size = 0x12000, scoped, tag = 'internal scratch']
  %s0 = inlined_call_operand.vmem [shape: f32[32,64], index: 0, kind: input, shape index: {}]
  %s1 = inlined_call_operand.vmem [shape: f32[64,128], index: 1, kind: input, shape index: {}]
  %s2 = inlined_call_operand.vmem [shape: f32[32,128], index: 2, kind: output, shape index: {0}]
  %s3 = inlined_call_operand.vmem [shape: f32[1,32,2], index: 3, kind: output, shape index: {1}]
  %4 = xla_tuple %s2, %s3
  %s5 = sld [smem:[#allocation0]]
  $region26: #{up_layer_forward.4} parent=0
    _
  %s7 = ssub.s32 1, %s5
  %s8 = scalar_select 0, %s7, %s5
  // Predicated region
  $region2: #{up_layer_forward.4} parent=0 // pred_check
    _
  $region3: #{up_layer_forward.4} parent=0 // pred_check_branch
    %10 = sbr.rel (0) target = $region5
  $region4: #{up_layer_forward.4} parent=0 // pred_region
    _
  $region5: #{up_layer_forward.4} parent=0 // pred_fallthru
    _
  // Predicated region
  $region6: #{up_layer_forward.4} parent=0 // pred_check
    _
  $region7: #{up_layer_forward.4} parent=0 // pred_check_branch
    %12 = sbr.rel (0) target = $region9
  $region8: #{up_layer_forward.4} parent=0 // pred_region
    _
  $region9: #{up_layer_forward.4} parent=0 // pred_fallthru
    _
  %v13 = vld [vmem:[%s0] sm:$0xff]
  %v14 = vld [vmem:[%s0 + $0x8] sm:$0xff]
  %v15 = vld [vmem:[%s0 + $0x10] sm:$0xff]
  %v16 = vld [vmem:[%s0 + $0x18] sm:$0xff]
  %v17 = vld [vmem:[%s1] sm:$0xff]
  %v18 = vld [vmem:[%s1 + $0x8] sm:$0xff]
  %v19 = vld [vmem:[%s1 + $0x10] sm:$0xff]
  %v20 = vld [vmem:[%s1 + $0x18] sm:$0xff]
  %v21 = vld [vmem:[%s1 + $0x20] sm:$0xff]
  %v22 = vld [vmem:[%s1 + $0x28] sm:$0xff]
  %v23 = vld [vmem:[%s1 + $0x30] sm:$0xff]
  %v24 = vld [vmem:[%s1 + $0x38] sm:$0xff]
  %vm25 = vcmask 523264
  %v27 = vsel %vm25, %v13, 0
  %v30 = vsel %vm25, %v14, 0
  %v33 = vsel %vm25, %v15, 0
  %v36 = vsel %vm25, %v16, 0
  %38 = vmatprep.subr.mxu0 0.0
  %39 = vmatpush1.msra.mxu0 %v17
  %40 = vmatprep.subr.mxu0 0.0
  %41 = vmatpush1.msra.mxu0 %v18
  %42 = vmatprep.subr.mxu0 0.0
  %43 = vmatpush1.msra.mxu0 %v19
  %44 = vmatprep.subr.mxu0 0.0
  %45 = vmatpush1.msra.mxu0 %v20
  %46 = vmatprep.subr.mxu0 0.0
  %47 = vmatpush1.msra.mxu0 %v21
  %48 = vmatprep.subr.mxu0 0.0
  %49 = vmatpush1.msra.mxu0 %v22
  %50 = vmatprep.subr.mxu0 0.0
  %51 = vmatpush1.msra.mxu0 %v23
  %52 = vmatprep.subr.mxu0 0.0
  %53 = vmatpush1.msra.mxu0 %v24
  %54 = vmatprep.subr.mxu0 0.0
  %55 = vmatpush1.msra.mxu0 0.0
  %56 = vmatprep.subr.mxu0 0.0
  %57 = vmatpush1.msra.mxu0 0.0
  %58 = vmatprep.subr.mxu0 0.0
  %59 = vmatpush1.msra.mxu0 0.0
  %60 = vmatprep.subr.mxu0 0.0
  %61 = vmatpush1.msra.mxu0 0.0
  %62 = vmatprep.subr.mxu0 0.0
  %63 = vmatpush1.msra.mxu0 0.0
  %64 = vmatprep.subr.mxu0 0.0
  %65 = vmatpush1.msra.mxu0 0.0
  %66 = vmatprep.subr.mxu0 0.0
  %67 = vmatpush1.msra.mxu0 0.0
  %68 = vmatprep.subr.mxu0 0.0
  %69 = vmatpush1.msra.mxu0 0.0
  %70 = vmatprep.subr.mxu0 0.0
  %71 = vmatpush1.msra.mxu0 0.0
  %72 = vmatprep.subr.mxu0 0.0
  %73 = vmatpush1.msra.mxu0 0.0
  %74 = vmatprep.subr.mxu0 0.0
  %75 = vmatpush1.msra.mxu0 0.0
  %76 = vmatprep.subr.mxu0 0.0
  %77 = vmatpush1.msra.mxu0 0.0
  %78 = vmatprep.subr.mxu0 0.0
  %79 = vmatpush1.msra.mxu0 0.0
  %80 = vmatprep.subr.mxu0 0.0
  %81 = vmatpush1.msra.mxu0 0.0
  %82 = vmatprep.subr.mxu0 0.0
  %83 = vmatpush1.msra.mxu0 0.0
  %84 = vmatprep.subr.mxu0 0.0
  %85 = vmatpush1.msra.mxu0 0.0
  %86 = vmatprep.subr.mxu0 0.0
  %87 = vmatpush1.msra.mxu0 0.0
  %88 = vmatprep.subr.mxu0 0.0
  %89 = vmatpush1.msra.mxu0 0.0
  %90 = vmatprep.subr.mxu0 0.0
  %91 = vmatpush1.msra.mxu0 0.0
  %92 = vmatprep.subr.mxu0 0.0
  %93 = vmatpush1.msra.mxu0 0.0
  %94 = vmatprep.subr.mxu0 0.0
  %95 = vmatpush1.msra.mxu0 0.0
  %96 = vmatprep.subr.mxu0 0.0
  %97 = vmatpush1.msra.mxu0 0.0
  %98 = vmatprep.subr.mxu0 0.0
  %99 = vmatpush1.msra.mxu0 0.0
  %100 = vmatprep.subr.mxu0 0.0
  %101 = vmatpush1.msra.mxu0 0.0
  %102 = vmatprep.mubr.f32.mxu0 0.0
  %103 = vmatmul.mubr.f32.gmra.mrb[0].mxu0 %v27
  %v104 = vpop.f32.mrb[0].mxu0
  %v105 = vadd.f32 0.0, %v104
  %v106 = vpop.f32.mrb[0].mxu0
  %107 = vmatprep.mubr.f32.mxu0 0.0
  %108 = vmatmul.mubr.f32.gmra.mrb[0].mxu0 %v30
  %v109 = vpop.f32.mrb[0].mxu0
  %v110 = vadd.f32 0.0, %v109
  %v111 = vpop.f32.mrb[0].mxu0
  %112 = vmatprep.mubr.f32.mxu0 0.0
  %113 = vmatmul.mubr.f32.gmra.mrb[0].mxu0 %v33
  %v114 = vpop.f32.mrb[0].mxu0
  %v115 = vadd.f32 0.0, %v114
  %v116 = vpop.f32.mrb[0].mxu0
  %117 = vmatprep.mubr.f32.mxu0 0.0
  %118 = vmatmul.mubr.f32.gmra.mrb[0].mxu0 %v36
  %v119 = vpop.f32.mrb[0].mxu0
  %v120 = vadd.f32 0.0, %v119
  %v121 = vpop.f32.mrb[0].mxu0
  %122 = vdwg.mxu0
  %123 = vst [vmem:[%s2] sm:$0xff] %v105
  %124 = vst [vmem:[%s2 + $0x8] sm:$0xff] %v110
  %125 = vst [vmem:[%s2 + $0x10] sm:$0xff] %v115
  %126 = vst [vmem:[%s2 + $0x18] sm:$0xff] %v120
  %127 = vadd.xlane.f32.xlu0 %v105
  %v128 = vpop.xlane.xlu0 %127
  %129 = vadd.xlane.f32.xlu0 %v110
  %v130 = vpop.xlane.xlu0 %129
  %131 = vadd.xlane.f32.xlu0 %v115
  %v132 = vpop.xlane.xlu0 %131
  %133 = vadd.xlane.f32.xlu0 %v120
  %v134 = vpop.xlane.xlu0 %133
  %v135 = vmul.f32 %v105, %v105
  %v136 = vmul.f32 %v110, %v110
  %v137 = vmul.f32 %v115, %v115
  %v138 = vmul.f32 %v120, %v120
  %139 = vadd.xlane.f32.xlu0 %v135
  %v140 = vpop.xlane.xlu0 %139
  %141 = vadd.xlane.f32.xlu0 %v136
  %v142 = vpop.xlane.xlu0 %141
  %143 = vadd.xlane.f32.xlu0 %v137
  %v144 = vpop.xlane.xlu0 %143
  %145 = vadd.xlane.f32.xlu0 %v138
  %v146 = vpop.xlane.xlu0 %145
  %vm147 = vcmask 7168
  %v148 = vsel %vm147, %v128, %v140
  %v149 = vsel %vm147, %v130, %v142
  %v150 = vsel %vm147, %v132, %v144
  %v151 = vsel %vm147, %v134, %v146
  %vm152 = vcmask 15360
  %153 = vst.msk [vmem:[%s3] sm:$0xff] %vm152, %v148
  %154 = vst.msk [vmem:[%s3 + $0x8] sm:$0xff] %vm152, %v149
  %155 = vst.msk [vmem:[%s3 + $0x10] sm:$0xff] %vm152, %v150
  %156 = vst.msk [vmem:[%s3 + $0x18] sm:$0xff] %vm152, %v151
  // Predicated region
  $region10: #{up_layer_forward.4} parent=0 // pred_check
    _
  $region11: #{up_layer_forward.4} parent=0 // pred_check_branch
    %158 = sbr.rel (0) target = $region13
  $region12: #{up_layer_forward.4} parent=0 // pred_region
    _
  $region13: #{up_layer_forward.4} parent=0 // pred_fallthru
    _
  // Predicated region
  $region14: #{up_layer_forward.4} parent=0 // pred_check
    _
  $region15: #{up_layer_forward.4} parent=0 // pred_check_branch
    %160 = sbr.rel (0) target = $region17
  $region16: #{up_layer_forward.4} parent=0 // pred_region
    _
  $region17: #{up_layer_forward.4} parent=0 // pred_fallthru
    _
  // Predicated region
  $region18: #{up_layer_forward.4} parent=0 // pred_check
    _
  $region19: #{up_layer_forward.4} parent=0 // pred_check_branch
    %162 = sbr.rel (0) target = $region21
  $region20: #{up_layer_forward.4} parent=0 // pred_region
    _
  $region21: #{up_layer_forward.4} parent=0 // pred_fallthru
    _
  // Predicated region
  $region22: #{up_layer_forward.4} parent=0 // pred_check
    _
  $region23: #{up_layer_forward.4} parent=0 // pred_check_branch
    %164 = sbr.rel (0) target = $region25
  $region24: #{up_layer_forward.4} parent=0 // pred_region
    _
  $region25: #{up_layer_forward.4} parent=0 // pred_fallthru
    _

// kernel: up_layer_forward.5
$region0: #{up_layer_forward.5}
  #allocation0 [shape = 'u32[]', space=smem, size = 0x4, offset = 0x4, fixed_abs, tag = 'smem constant byte address 0x4 - core index']
  #allocation1 [shape = 'u32[144,128]{1,0:T(1,128)}', space=vmem, size = 0x12000, scoped, tag = 'internal scratch']
  #allocation2 [shape = 'f32[1,1]{1,0:T(1,128)S(1)}', space=vmem, size = 0x200, scoped, tag = 'scoped memory for up_layer_forward.5']
  %s0 = inlined_call_operand.vmem [shape: f32[4,1024], index: 0, kind: input, shape index: {}]
  %s1 = inlined_call_operand.vmem [shape: f32[4,1], index: 1, kind: input, shape index: {}]
  %s2 = inlined_call_operand.vmem [shape: f32[4,1], index: 2, kind: input, shape index: {}]
  %s3 = inlined_call_operand.<no memory space> [shape: f32[1,1], index: 3, kind: input, shape index: {}]
  %s4 = inlined_call_operand.vmem [shape: f32[4,1024], index: 4, kind: output, shape index: {}]
  %s5 = sld [smem:[#allocation0]]
  $region49: #{up_layer_forward.5} parent=0
    _
  %s7 = ssub.s32 1, %s5
  %s8 = scalar_select 0, %s7, %s5
  %v9 = vstv %s3
  %10 = vst [vmem:[#allocation2] sm:$0x1] %v9
  loop: start=0, step=1, limit=4
  $region2: #{up_layer_forward.5} parent=0 // loop_pre_header
    _
  $region3: #{up_layer_forward.5} parent=0 // loop_header
    %s12 = sphi 0, %s16
    %p13 = scmp.ge.s32.totalorder %s12, 4
    %s22 = sphi 0, %s24
    %s25 = sphi 0, %s22
    %s26 = sphi 0, %s25
    %s42 = sphi 0, %s26
    %s46 = sphi 0, %s46
    %s48 = sphi 0, %s46
    %s49 = sphi 0, %s48
    %s63 = sphi 0, %s49
    %s67 = sphi 0, %s67
    %s69 = sphi 0, %s67
    %s70 = sphi 0, %s69
    %s84 = sphi 0, %s70
    %s88 = sphi 0, %s88
    %s90 = sphi 0, %s88
    %s91 = sphi 0, %s90
    %s105 = sphi 0, %s91
    %s111 = sphi 0, %s113
    %s114 = sphi 0, %s111
    %s115 = sphi 0, %s114
    %s131 = sphi 0, %s115
  $region4: #{up_layer_forward.5} parent=0 // loop_header_branch
    %15 = sbr.rel (%p13) target = $region8
  $region5: #{up_layer_forward.5} parent=0 // loop_body
    %s17 = ssub.s32 %s12, 1
    %s18 = ssub.s32 %s12, 2
    %s19 = sadd.s32 %s12, 1
    %s20 = ssub.s32 %s12, %s19
    %p21 = scmp.eq.s32.totalorder %s20, 0
    %s23 = sadd.s32 %s22, 1
    %s24 = scalar_select %p21, %s22, %s23
    %p27 = pneg %p21
    %p28 = scmp.eq.s32.totalorder %s12, 1
    %p29 = por %p27, %p28
    %p30 = scmp.ne.s32.totalorder %s22, %s25
    %p31 = scmp.eq.s32.totalorder %s12, 0
    %p32 = por %p30, %p31
    %p33 = scmp.ne.s32.totalorder %s22, %s25
    %p34 = scmp.eq.s32.totalorder %s17, 1
    %p35 = por %p33, %p34
    %p36 = scmp.ne.s32.totalorder %s25, %s26
    %p37 = scmp.eq.s32.totalorder %s17, 0
    %p38 = por %p36, %p37
    %p39 = scmp.ne.s32.totalorder %s25, %s26
    %p40 = scmp.eq.s32.totalorder %s18, 1
    %p41 = por %p39, %p40
    %p43 = scmp.ne.s32.totalorder %s26, %s42
    %p44 = scmp.eq.s32.totalorder %s18, 0
    %p45 = por %p43, %p44
    %s47 = sadd.s32 %s46, 1
    %p50 = scmp.eq.s32.totalorder %s12, 1
    %p51 = scmp.ne.s32.totalorder %s46, %s48
    %p52 = scmp.eq.s32.totalorder %s12, 0
    %p53 = por %p51, %p52
    %p54 = scmp.ne.s32.totalorder %s46, %s48
    %p55 = scmp.eq.s32.totalorder %s17, 1
    %p56 = por %p54, %p55
    %p57 = scmp.ne.s32.totalorder %s48, %s49
    %p58 = scmp.eq.s32.totalorder %s17, 0
    %p59 = por %p57, %p58
    %p60 = scmp.ne.s32.totalorder %s48, %s49
    %p61 = scmp.eq.s32.totalorder %s18, 1
    %p62 = por %p60, %p61
    %p64 = scmp.ne.s32.totalorder %s49, %s63
    %p65 = scmp.eq.s32.totalorder %s18, 0
    %p66 = por %p64, %p65
    %s68 = sadd.s32 %s67, 1
    %p71 = scmp.eq.s32.totalorder %s12, 1
    %p72 = scmp.ne.s32.totalorder %s67, %s69
    %p73 = scmp.eq.s32.totalorder %s12, 0
    %p74 = por %p72, %p73
    %p75 = scmp.ne.s32.totalorder %s67, %s69
    %p76 = scmp.eq.s32.totalorder %s17, 1
    %p77 = por %p75, %p76
    %p78 = scmp.ne.s32.totalorder %s69, %s70
    %p79 = scmp.eq.s32.totalorder %s17, 0
    %p80 = por %p78, %p79
    %p81 = scmp.ne.s32.totalorder %s69, %s70
    %p82 = scmp.eq.s32.totalorder %s18, 1
    %p83 = por %p81, %p82
    %p85 = scmp.ne.s32.totalorder %s70, %s84
    %p86 = scmp.eq.s32.totalorder %s18, 0
    %p87 = por %p85, %p86
    %s89 = sadd.s32 %s88, 1
    %p92 = scmp.eq.s32.totalorder %s12, 1
    %p93 = scmp.ne.s32.totalorder %s88, %s90
    %p94 = scmp.eq.s32.totalorder %s12, 0
    %p95 = por %p93, %p94
    %p96 = scmp.ne.s32.totalorder %s88, %s90
    %p97 = scmp.eq.s32.totalorder %s17, 1
    %p98 = por %p96, %p97
    %p99 = scmp.ne.s32.totalorder %s90, %s91
    %p100 = scmp.eq.s32.totalorder %s17, 0
    %p101 = por %p99, %p100
    %p102 = scmp.ne.s32.totalorder %s90, %s91
    %p103 = scmp.eq.s32.totalorder %s18, 1
    %p104 = por %p102, %p103
    %p106 = scmp.ne.s32.totalorder %s91, %s105
    %p107 = scmp.eq.s32.totalorder %s18, 0
    %p108 = por %p106, %p107
    %s109 = ssub.s32 %s12, %s19
    %p110 = scmp.eq.s32.totalorder %s109, 0
    %s112 = sadd.s32 %s111, 1
    %s113 = scalar_select %p110, %s111, %s112
    %p116 = pneg %p110
    %p117 = scmp.eq.s32.totalorder %s12, 1
    %p118 = por %p116, %p117
    %p119 = scmp.ne.s32.totalorder %s111, %s114
    %p120 = scmp.eq.s32.totalorder %s12, 0
    %p121 = por %p119, %p120
    %p122 = scmp.ne.s32.totalorder %s111, %s114
    %p123 = scmp.eq.s32.totalorder %s17, 1
    %p124 = por %p122, %p123
    %p125 = scmp.ne.s32.totalorder %s114, %s115
    %p126 = scmp.eq.s32.totalorder %s17, 0
    %p127 = por %p125, %p126
    %p128 = scmp.ne.s32.totalorder %s114, %s115
    %p129 = scmp.eq.s32.totalorder %s18, 1
    %p130 = por %p128, %p129
    %p132 = scmp.ne.s32.totalorder %s115, %s131
    %p133 = scmp.eq.s32.totalorder %s18, 0
    %p134 = por %p132, %p133
    %p135 = scmp.le.s32.totalorder 1, %s12
    %p136 = scmp.lt.s32.totalorder %s12, 3
    %p137 = pnand %p135, %p136
    %p138 = pneg %p137
    // Predicated region
    $region9: #{up_layer_forward.5} parent=5 // pred_check
      _
    $region10: #{up_layer_forward.5} parent=5 // pred_check_branch
      %140 = sbr.rel (%p137) target = $region12
    $region11: #{up_layer_forward.5} parent=5 // pred_region
      %s141 = ssub.s32 %s12, 1
      // Predicated region
      $region13: #{up_layer_forward.5} parent=11 // pred_check
        %p142 = pneg %p59
      $region14: #{up_layer_forward.5} parent=11 // pred_check_branch
        %144 = sbr.rel (%p142) target = $region16
      $region15: #{up_layer_forward.5} parent=11 // pred_region
        _
      $region16: #{up_layer_forward.5} parent=11 // pred_fallthru
        _
      // Predicated region
      $region17: #{up_layer_forward.5} parent=11 // pred_check
        %p145 = pneg %p80
      $region18: #{up_layer_forward.5} parent=11 // pred_check_branch
        %147 = sbr.rel (%p145) target = $region20
      $region19: #{up_layer_forward.5} parent=11 // pred_region
        _
      $region20: #{up_layer_forward.5} parent=11 // pred_fallthru
        _
      // Predicated region
      $region21: #{up_layer_forward.5} parent=11 // pred_check
        %p148 = pneg %p101
      $region22: #{up_layer_forward.5} parent=11 // pred_check_branch
        %150 = sbr.rel (%p148) target = $region24
      $region23: #{up_layer_forward.5} parent=11 // pred_region
        _
      $region24: #{up_layer_forward.5} parent=11 // pred_fallthru
        _
    $region12: #{up_layer_forward.5} parent=5 // pred_fallthru
      _
    %p151 = scmp.lt.s32.totalorder %s12, 2
    // Predicated region
    $region25: #{up_layer_forward.5} parent=5 // pred_check
      %p152 = pneg %p151
    $region26: #{up_layer_forward.5} parent=5 // pred_check_branch
      %154 = sbr.rel (%p152) target = $region28
    $region27: #{up_layer_forward.5} parent=5 // pred_region
      // Predicated region
      $region29: #{up_layer_forward.5} parent=27 // pred_check
        %p155 = pneg %p32
      $region30: #{up_layer_forward.5} parent=27 // pred_check_branch
        %157 = sbr.rel (%p155) target = $region32
      $region31: #{up_layer_forward.5} parent=27 // pred_region
        %s158 = smul.u32 4, %s12
        %p159 = scmp.lt.s32.totalorder %s158, 7
        %s160 = scalar_select %p159, %s158, 7
        %s161 = smul.addr %s160, 4
        %s162 = scalar_lea.vmem %s0, %s161
        %s163 = smul.u32 4, %s12
      $region32: #{up_layer_forward.5} parent=27 // pred_fallthru
        _
    $region28: #{up_layer_forward.5} parent=5 // pred_fallthru
      _
    %p164 = scmp.le.s32.totalorder 1, %s12
    %p165 = scmp.lt.s32.totalorder %s12, 3
    %p166 = pnand %p164, %p165
    %p167 = pneg %p166
    // Predicated region
    $region33: #{up_layer_forward.5} parent=5 // pred_check
      _
    $region34: #{up_layer_forward.5} parent=5 // pred_check_branch
      %169 = sbr.rel (%p166) target = $region36
    $region35: #{up_layer_forward.5} parent=5 // pred_region
      %s170 = ssub.s32 %s12, 1
      %s171 = smul.u32 4, %s17
      %p172 = scmp.lt.s32.totalorder %s171, 7
      %s173 = scalar_select %p172, %s171, 7
      %s174 = smul.addr %s173, 4
      %s175 = scalar_lea.vmem %s0, %s174
      %p176 = pneg %p38
      %p177 = pneg %p35
      %p178 = pneg %p59
      %p179 = pneg %p56
      %p180 = pneg %p80
      %p181 = pneg %p77
      %p182 = pneg %p101
      %p183 = pneg %p98
      %p184 = pneg %p127
      %p185 = pneg %p124
      %s186 = smul.u32 4, %s17
      %p187 = scmp.lt.s32.totalorder %s186, 7
      %s188 = scalar_select %p187, %s186, 7
      %s189 = smul.addr %s188, 4
      %s190 = scalar_lea.vmem %s4, %s189
      %s191 = smul.u32 4, %s17
      %p192 = scmp.lt.s32.totalorder %s191, 7
      %s193 = scalar_select %p192, %s191, 7
      %s194 = smul.addr %s193, 4
      %s195 = scalar_lea.vmem %s0, %s194
      %s196 = smul.u32 4, %s17
      %s197 = smul.u32 4, %s17
      %p198 = scmp.lt.s32.totalorder %s197, 7
      %s199 = scalar_select %p198, %s197, 7
      %s200 = smul.addr %s199, 4
      %s201 = scalar_lea.vmem %s4, %s200
      %s202 = smul.u32 4, %s17
      %v203 = vld [vmem:[%s195] sm:$0xff]
      %v204 = vld [vmem:[%s195 + $0x8] sm:$0xff]
      %v205 = vld [vmem:[%s1] sm:$0xf]
      %207 = vset.pattern.permute.xlu0 0
      %208 = vperm.xlu0 %207, %v205
      %v209 = vpop.permute.xlu0 %208
      %v211 = vunpack.c.l.s4 839922192
      %v212 = vunpack.c.0.s8 %v211
      %v213 = vlaneseq
      %v214 = vshrl.u32 %v213, 7
      %v215 = vsub.s32 %v212, %v214
      %v216 = vrot.slane %v209, %v215
      %v218 = vmul.f32 %v203, %v216
      %v219 = vmul.f32 %v204, %v216
      %v220 = vld [vmem:[%s2] sm:$0xf]
      %222 = vset.pattern.permute.xlu0 0
      %223 = vperm.xlu0 %222, %v220
      %v224 = vpop.permute.xlu0 %223
      %v226 = vunpack.c.l.s4 839922192
      %v227 = vunpack.c.0.s8 %v226
      %v228 = vlaneseq
      %v229 = vshrl.u32 %v228, 7
      %v230 = vsub.s32 %v227, %v229
      %v231 = vrot.slane %v224, %v230
      %v233 = vadd.f32 %v218, %v231
      %v234 = vadd.f32 %v219, %v231
      %v235 = vld [vmem:[#allocation2] sm:$0x1]
      %s236 = vtos %v235
      %vm237 = vcmp.gt.f32.partialorder %v233, 0.0
      %vm238 = vcmp.gt.f32.partialorder %v234, 0.0
      %v239 = vstv %s236
      %v240 = vmul.f32 %v239, %v233
      %v241 = vmul.f32 %v239, %v234
      %v242 = vsel %vm237, %v233, %v240
      %v243 = vsel %vm238, %v234, %v241
      %244 = vst [vmem:[%s201] sm:$0xff] %v242
      %245 = vst [vmem:[%s201 + $0x8] sm:$0xff] %v243
      %s246 = smul.u32 4, %s17
      %p247 = scmp.lt.s32.totalorder %s246, 7
      %s248 = scalar_select %p247, %s246, 7
      %s249 = smul.addr %s248, 4
      %s250 = scalar_lea.vmem %s4, %s249
      // Predicated region
      $region37: #{up_layer_forward.5} parent=35 // pred_check
        %p251 = pneg %p124
      $region38: #{up_layer_forward.5} parent=35 // pred_check_branch
        %253 = sbr.rel (%p251) target = $region40
      $region39: #{up_layer_forward.5} parent=35 // pred_region
        %s254 = smul.u32 4, %s17
      $region40: #{up_layer_forward.5} parent=35 // pred_fallthru
        _
    $region36: #{up_layer_forward.5} parent=5 // pred_fallthru
      _
    %p255 = scmp.le.s32.totalorder 2, %s12
    // Predicated region
    $region41: #{up_layer_forward.5} parent=5 // pred_check
      %p256 = pneg %p255
    $region42: #{up_layer_forward.5} parent=5 // pred_check_branch
      %258 = sbr.rel (%p256) target = $region44
    $region43: #{up_layer_forward.5} parent=5 // pred_region
      %s259 = ssub.s32 %s12, 2
      // Predicated region
      $region45: #{up_layer_forward.5} parent=43 // pred_check
        %p260 = pneg %p130
      $region46: #{up_layer_forward.5} parent=43 // pred_check_branch
        %262 = sbr.rel (%p260) target = $region48
      $region47: #{up_layer_forward.5} parent=43 // pred_region
        %s263 = smul.u32 4, %s18
        %p264 = scmp.lt.s32.totalorder %s263, 7
        %s265 = scalar_select %p264, %s263, 7
        %s266 = smul.addr %s265, 4
        %s267 = scalar_lea.vmem %s4, %s266
      $region48: #{up_layer_forward.5} parent=43 // pred_fallthru
        _
    $region44: #{up_layer_forward.5} parent=5 // pred_fallthru
      _
  $region6: #{up_layer_forward.5} parent=0 // loop_footer
    %s16 = sadd.s32 1, %s12
  $region7: #{up_layer_forward.5} parent=0 // loop_footer_branch
    %11 = sbr.rel target = $region3
  $region8: #{up_layer_forward.5} parent=0 // loop_exit
    _

// kernel: up_layer_forward.6
$region0: #{up_layer_forward.6}
  #allocation0 [shape = 'u32[]', space=smem, size = 0x4, offset = 0x4, fixed_abs, tag = 'smem constant byte address 0x4 - core index']
  #allocation1 [shape = 'u32[144,128]{1,0:T(1,128)}', space=vmem, size = 0x12000, scoped, tag = 'internal scratch']
  %s0 = inlined_call_operand.vmem [shape: f32[4,108], index: 0, kind: input, shape index: {}]
  %s1 = inlined_call_operand.vmem [shape: f32[108,1024], index: 1, kind: input, shape index: {}]
  %s2 = inlined_call_operand.vmem [shape: f32[4,1024], index: 2, kind: output, shape index: {0}]
  %s3 = inlined_call_operand.vmem [shape: f32[2,4,2], index: 3, kind: output, shape index: {1}]
  %4 = xla_tuple %s2, %s3
  %s5 = sld [smem:[#allocation0]]
  $region72: #{up_layer_forward.6} parent=0
    _
  %s7 = ssub.s32 1, %s5
  %s8 = scalar_select 0, %s7, %s5
  $region1: #{up_layer_forward.6} parent=0
    #allocation2 [shape = 'u8[458752]{0}', space=vmem, size = 0x70000, scoped, tag = 'input window, operand 1']
    loop: start=0, step=1, limit=4
    $region2: #{up_layer_forward.6} parent=1 // loop_pre_header
      _
    $region3: #{up_layer_forward.6} parent=1 // loop_header
      %s10 = sphi 0, %s14
      %p11 = scmp.ge.s32.totalorder %s10, 4
      %s18 = sphi 0, %s18
      %s20 = sphi 0, %s18
      %s21 = sphi 0, %s20
      %s35 = sphi 0, %s21
      %s41 = sphi 0, %s43
      %s44 = sphi 0, %s41
      %s45 = sphi 0, %s44
      %s61 = sphi 0, %s45
      %s67 = sphi 0, %s69
      %s70 = sphi 0, %s67
      %s71 = sphi 0, %s70
      %s87 = sphi 0, %s71
      %s93 = sphi 0, %s95
      %s96 = sphi 0, %s93
      %s97 = sphi 0, %s96
      %s113 = sphi 0, %s97
    $region4: #{up_layer_forward.6} parent=1 // loop_header_branch
      %13 = sbr.rel (%p11) target = $region8
    $region5: #{up_layer_forward.6} parent=1 // loop_body
      %s15 = ssub.s32 %s10, 1
      %s16 = ssub.s32 %s10, 2
      %s17 = sadd.s32 %s10, 1
      %s19 = sadd.s32 %s18, 1
      %p22 = scmp.eq.s32.totalorder %s10, 1
      %p23 = scmp.ne.s32.totalorder %s18, %s20
      %p24 = scmp.eq.s32.totalorder %s10, 0
      %p25 = por %p23, %p24
      %p26 = scmp.ne.s32.totalorder %s18, %s20
      %p27 = scmp.eq.s32.totalorder %s15, 1
      %p28 = por %p26, %p27
      %p29 = scmp.ne.s32.totalorder %s20, %s21
      %p30 = scmp.eq.s32.totalorder %s15, 0
      %p31 = por %p29, %p30
      %p32 = scmp.ne.s32.totalorder %s20, %s21
      %p33 = scmp.eq.s32.totalorder %s16, 1
      %p34 = por %p32, %p33
      %p36 = scmp.ne.s32.totalorder %s21, %s35
      %p37 = scmp.eq.s32.totalorder %s16, 0
      %p38 = por %p36, %p37
      %s39 = ssub.s32 %s10, %s17
      %p40 = scmp.eq.s32.totalorder %s39, 0
      %s42 = sadd.s32 %s41, 1
      %s43 = scalar_select %p40, %s41, %s42
      %p46 = pneg %p40
      %p47 = scmp.eq.s32.totalorder %s10, 1
      %p48 = por %p46, %p47
      %p49 = scmp.ne.s32.totalorder %s41, %s44
      %p50 = scmp.eq.s32.totalorder %s10, 0
      %p51 = por %p49, %p50
      %p52 = scmp.ne.s32.totalorder %s41, %s44
      %p53 = scmp.eq.s32.totalorder %s15, 1
      %p54 = por %p52, %p53
      %p55 = scmp.ne.s32.totalorder %s44, %s45
      %p56 = scmp.eq.s32.totalorder %s15, 0
      %p57 = por %p55, %p56
      %p58 = scmp.ne.s32.totalorder %s44, %s45
      %p59 = scmp.eq.s32.totalorder %s16, 1
      %p60 = por %p58, %p59
      %p62 = scmp.ne.s32.totalorder %s45, %s61
      %p63 = scmp.eq.s32.totalorder %s16, 0
      %p64 = por %p62, %p63
      %s65 = ssub.s32 %s10, %s17
      %p66 = scmp.eq.s32.totalorder %s65, 0
      %s68 = sadd.s32 %s67, 1
      %s69 = scalar_select %p66, %s67, %s68
      %p72 = pneg %p66
      %p73 = scmp.eq.s32.totalorder %s10, 1
      %p74 = por %p72, %p73
      %p75 = scmp.ne.s32.totalorder %s67, %s70
      %p76 = scmp.eq.s32.totalorder %s10, 0
      %p77 = por %p75, %p76
      %p78 = scmp.ne.s32.totalorder %s67, %s70
      %p79 = scmp.eq.s32.totalorder %s15, 1
      %p80 = por %p78, %p79
      %p81 = scmp.ne.s32.totalorder %s70, %s71
      %p82 = scmp.eq.s32.totalorder %s15, 0
      %p83 = por %p81, %p82
      %p84 = scmp.ne.s32.totalorder %s70, %s71
      %p85 = scmp.eq.s32.totalorder %s16, 1
      %p86 = por %p84, %p85
      %p88 = scmp.ne.s32.totalorder %s71, %s87
      %p89 = scmp.eq.s32.totalorder %s16, 0
      %p90 = por %p88, %p89
      %s91 = ssub.s32 %s10, %s17
      %p92 = scmp.eq.s32.totalorder %s91, 0
      %s94 = sadd.s32 %s93, 1
      %s95 = scalar_select %p92, %s93, %s94
      %p98 = pneg %p92
      %p99 = scmp.eq.s32.totalorder %s10, 1
      %p100 = por %p98, %p99
      %p101 = scmp.ne.s32.totalorder %s93, %s96
      %p102 = scmp.eq.s32.totalorder %s10, 0
      %p103 = por %p101, %p102
      %p104 = scmp.ne.s32.totalorder %s93, %s96
      %p105 = scmp.eq.s32.totalorder %s15, 1
      %p106 = por %p104, %p105
      %p107 = scmp.ne.s32.totalorder %s96, %s97
      %p108 = scmp.eq.s32.totalorder %s15, 0
      %p109 = por %p107, %p108
      %p110 = scmp.ne.s32.totalorder %s96, %s97
      %p111 = scmp.eq.s32.totalorder %s16, 1
      %p112 = por %p110, %p111
      %p114 = scmp.ne.s32.totalorder %s97, %s113
      %p115 = scmp.eq.s32.totalorder %s16, 0
      %p116 = por %p114, %p115
      %p117 = scmp.le.s32.totalorder 1, %s10
      %p118 = scmp.lt.s32.totalorder %s10, 3
      %p119 = pnand %p117, %p118
      %p120 = pneg %p119
      // Predicated region
      $region9: #{up_layer_forward.6} parent=5 // pred_check
        _
      $region10: #{up_layer_forward.6} parent=5 // pred_check_branch
        %122 = sbr.rel (%p119) target = $region12
      $region11: #{up_layer_forward.6} parent=5 // pred_region
        %s123 = ssub.s32 %s10, 1
        // Predicated region
        $region13: #{up_layer_forward.6} parent=11 // pred_check
          %p124 = pneg %p31
        $region14: #{up_layer_forward.6} parent=11 // pred_check_branch
          %126 = sbr.rel (%p124) target = $region16
        $region15: #{up_layer_forward.6} parent=11 // pred_region
          _
        $region16: #{up_layer_forward.6} parent=11 // pred_fallthru
          _
      $region12: #{up_layer_forward.6} parent=5 // pred_fallthru
        _
      %p127 = scmp.lt.s32.totalorder %s10, 2
      // Predicated region
      $region17: #{up_layer_forward.6} parent=5 // pred_check
        %p128 = pneg %p127
      $region18: #{up_layer_forward.6} parent=5 // pred_check_branch
        %130 = sbr.rel (%p128) target = $region20
      $region19: #{up_layer_forward.6} parent=5 // pred_region
        // Predicated region
        $region21: #{up_layer_forward.6} parent=19 // pred_check
          %p131 = pneg %p51
        $region22: #{up_layer_forward.6} parent=19 // pred_check_branch
          %133 = sbr.rel (%p131) target = $region24
        $region23: #{up_layer_forward.6} parent=19 // pred_region
          %s134 = sand.u32 %s41, 1
          %s135 = sand.u32 %s41, 1
          %s136 = smul.addr %s135, 448
          %s137 = scalar_lea.vmem [#allocation2], %s136
          %s138 = smul.u32 4, %s10
          %s139 = smul.addr %s138, 8
          %s140 = scalar_lea.vmem %s1, %s139
          // Predicated region
          $region25: #{up_layer_forward.6} parent=23 // pred_check
            _
          $region26: #{up_layer_forward.6} parent=23 // pred_check_branch
            %142 = sbr.rel (0) target = $region28
          $region27: #{up_layer_forward.6} parent=23 // pred_region
            // Predicated region
            $region29: #{up_layer_forward.6} parent=27 // pred_check
              _
            $region30: #{up_layer_forward.6} parent=27 // pred_check_branch
              %144 = sbr.rel (0) target = $region32
            $region31: #{up_layer_forward.6} parent=27 // pred_region
              loop: start=0, step=1, limit=1
              $region33: #{up_layer_forward.6} parent=31 // loop_pre_header
                _
              $region34: #{up_layer_forward.6} parent=31 // loop_header
                %s146 = sphi 0, %s150
                %p147 = scmp.ge.s32.totalorder %s146, 1
                %s151 = sphi %s140, %s140
                %s152 = sphi %s137, %s137
              $region35: #{up_layer_forward.6} parent=31 // loop_header_branch
                %149 = sbr.rel (%p147) target = $region39
              $region36: #{up_layer_forward.6} parent=31 // loop_body
                %v153 = vld [vmem:[%s151] sm:$0xff]
                %154 = vst [vmem:[%s152] sm:$0xff] %v153
                %v155 = vld [vmem:[%s151 + $0x8] sm:$0xff]
                %156 = vst [vmem:[%s152 + $0x8] sm:$0xff] %v155
                %v157 = vld [vmem:[%s151 + $0x10] sm:$0xff]
                %158 = vst [vmem:[%s152 + $0x10] sm:$0xff] %v157
                %v159 = vld [vmem:[%s151 + $0x18] sm:$0xff]
                %160 = vst [vmem:[%s152 + $0x18] sm:$0xff] %v159
                %v161 = vld [vmem:[%s151 + $0x40] sm:$0xff]
                %162 = vst [vmem:[%s152 + $0x20] sm:$0xff] %v161
                %v163 = vld [vmem:[%s151 + $0x48] sm:$0xff]
                %164 = vst [vmem:[%s152 + $0x28] sm:$0xff] %v163
                %v165 = vld [vmem:[%s151 + $0x50] sm:$0xff]
                %166 = vst [vmem:[%s152 + $0x30] sm:$0xff] %v165
                %v167 = vld [vmem:[%s151 + $0x58] sm:$0xff]
                %168 = vst [vmem:[%s152 + $0x38] sm:$0xff] %v167
                %v169 = vld [vmem:[%s151 + $0x80] sm:$0xff]
                %170 = vst [vmem:[%s152 + $0x40] sm:$0xff] %v169
                %v171 = vld [vmem:[%s151 + $0x88] sm:$0xff]
                %172 = vst [vmem:[%s152 + $0x48] sm:$0xff] %v171
                %v173 = vld [vmem:[%s151 + $0x90] sm:$0xff]
                %174 = vst [vmem:[%s152 + $0x50] sm:$0xff] %v173
                %v175 = vld [vmem:[%s151 + $0x98] sm:$0xff]
                %176 = vst [vmem:[%s152 + $0x58] sm:$0xff] %v175
                %v177 = vld [vmem:[%s151 + $0xc0] sm:$0xff]
                %178 = vst [vmem:[%s152 + $0x60] sm:$0xff] %v177
                %v179 = vld [vmem:[%s151 + $0xc8] sm:$0xff]
                %180 = vst [vmem:[%s152 + $0x68] sm:$0xff] %v179
                %v181 = vld [vmem:[%s151 + $0xd0] sm:$0xff]
                %182 = vst [vmem:[%s152 + $0x70] sm:$0xff] %v181
                %v183 = vld [vmem:[%s151 + $0xd8] sm:$0xff]
                %184 = vst [vmem:[%s152 + $0x78] sm:$0xff] %v183
                %v185 = vld [vmem:[%s151 + $0x100] sm:$0xff]
                %186 = vst [vmem:[%s152 + $0x80] sm:$0xff] %v185
                %v187 = vld [vmem:[%s151 + $0x108] sm:$0xff]
                %188 = vst [vmem:[%s152 + $0x88] sm:$0xff] %v187
                %v189 = vld [vmem:[%s151 + $0x110] sm:$0xff]
                %190 = vst [vmem:[%s152 + $0x90] sm:$0xff] %v189
                %v191 = vld [vmem:[%s151 + $0x118] sm:$0xff]
                %192 = vst [vmem:[%s152 + $0x98] sm:$0xff] %v191
                %v193 = vld [vmem:[%s151 + $0x140] sm:$0xff]
                %194 = vst [vmem:[%s152 + $0xa0] sm:$0xff] %v193
                %v195 = vld [vmem:[%s151 + $0x148] sm:$0xff]
                %196 = vst [vmem:[%s152 + $0xa8] sm:$0xff] %v195
                %v197 = vld [vmem:[%s151 + $0x150] sm:$0xff]
                %198 = vst [vmem:[%s152 + $0xb0] sm:$0xff] %v197
                %v199 = vld [vmem:[%s151 + $0x158] sm:$0xff]
                %200 = vst [vmem:[%s152 + $0xb8] sm:$0xff] %v199
                %v201 = vld [vmem:[%s151 + $0x180] sm:$0xff]
                %202 = vst [vmem:[%s152 + $0xc0] sm:$0xff] %v201
                %v203 = vld [vmem:[%s151 + $0x188] sm:$0xff]
                %204 = vst [vmem:[%s152 + $0xc8] sm:$0xff] %v203
                %v205 = vld [vmem:[%s151 + $0x190] sm:$0xff]
                %206 = vst [vmem:[%s152 + $0xd0] sm:$0xff] %v205
                %v207 = vld [vmem:[%s151 + $0x198] sm:$0xff]
                %208 = vst [vmem:[%s152 + $0xd8] sm:$0xff] %v207
                %v209 = vld [vmem:[%s151 + $0x1c0] sm:$0xff]
                %210 = vst [vmem:[%s152 + $0xe0] sm:$0xff] %v209
                %v211 = vld [vmem:[%s151 + $0x1c8] sm:$0xff]
                %212 = vst [vmem:[%s152 + $0xe8] sm:$0xff] %v211
                %v213 = vld [vmem:[%s151 + $0x1d0] sm:$0xff]
                %214 = vst [vmem:[%s152 + $0xf0] sm:$0xff] %v213
                %v215 = vld [vmem:[%s151 + $0x1d8] sm:$0xff]
                %216 = vst [vmem:[%s152 + $0xf8] sm:$0xff] %v215
                %v217 = vld [vmem:[%s151 + $0x200] sm:$0xff]
                %218 = vst [vmem:[%s152 + $0x100] sm:$0xff] %v217
                %v219 = vld [vmem:[%s151 + $0x208] sm:$0xff]
                %220 = vst [vmem:[%s152 + $0x108] sm:$0xff] %v219
                %v221 = vld [vmem:[%s151 + $0x210] sm:$0xff]
                %222 = vst [vmem:[%s152 + $0x110] sm:$0xff] %v221
                %v223 = vld [vmem:[%s151 + $0x218] sm:$0xff]
                %224 = vst [vmem:[%s152 + $0x118] sm:$0xff] %v223
                %v225 = vld [vmem:[%s151 + $0x240] sm:$0xff]
                %226 = vst [vmem:[%s152 + $0x120] sm:$0xff] %v225
                %v227 = vld [vmem:[%s151 + $0x248] sm:$0xff]
                %228 = vst [vmem:[%s152 + $0x128] sm:$0xff] %v227
                %v229 = vld [vmem:[%s151 + $0x250] sm:$0xff]
                %230 = vst [vmem:[%s152 + $0x130] sm:$0xff] %v229
                %v231 = vld [vmem:[%s151 + $0x258] sm:$0xff]
                %232 = vst [vmem:[%s152 + $0x138] sm:$0xff] %v231
                %v233 = vld [vmem:[%s151 + $0x280] sm:$0xff]
                %234 = vst [vmem:[%s152 + $0x140] sm:$0xff] %v233
                %v235 = vld [vmem:[%s151 + $0x288] sm:$0xff]
                %236 = vst [vmem:[%s152 + $0x148] sm:$0xff] %v235
                %v237 = vld [vmem:[%s151 + $0x290] sm:$0xff]
                %238 = vst [vmem:[%s152 + $0x150] sm:$0xff] %v237
                %v239 = vld [vmem:[%s151 + $0x298] sm:$0xff]
                %240 = vst [vmem:[%s152 + $0x158] sm:$0xff] %v239
                %v241 = vld [vmem:[%s151 + $0x2c0] sm:$0xff]
                %242 = vst [vmem:[%s152 + $0x160] sm:$0xff] %v241
                %v243 = vld [vmem:[%s151 + $0x2c8] sm:$0xff]
                %244 = vst [vmem:[%s152 + $0x168] sm:$0xff] %v243
                %v245 = vld [vmem:[%s151 + $0x2d0] sm:$0xff]
                %246 = vst [vmem:[%s152 + $0x170] sm:$0xff] %v245
                %v247 = vld [vmem:[%s151 + $0x2d8] sm:$0xff]
                %248 = vst [vmem:[%s152 + $0x178] sm:$0xff] %v247
                %v249 = vld [vmem:[%s151 + $0x300] sm:$0xff]
                %250 = vst [vmem:[%s152 + $0x180] sm:$0xff] %v249
                %v251 = vld [vmem:[%s151 + $0x308] sm:$0xff]
                %252 = vst [vmem:[%s152 + $0x188] sm:$0xff] %v251
                %v253 = vld [vmem:[%s151 + $0x310] sm:$0xff]
                %254 = vst [vmem:[%s152 + $0x190] sm:$0xff] %v253
                %v255 = vld [vmem:[%s151 + $0x318] sm:$0xff]
                %256 = vst [vmem:[%s152 + $0x198] sm:$0xff] %v255
                %v257 = vld [vmem:[%s151 + $0x340] sm:$0xff]
                %258 = vst [vmem:[%s152 + $0x1a0] sm:$0xff] %v257
                %v259 = vld [vmem:[%s151 + $0x348] sm:$0xff]
                %260 = vst [vmem:[%s152 + $0x1a8] sm:$0xff] %v259
                %v261 = vld [vmem:[%s151 + $0x350] sm:$0xff]
                %262 = vst [vmem:[%s152 + $0x1b0] sm:$0xff] %v261
                %v263 = vld [vmem:[%s151 + $0x358] sm:$0xff]
                %264 = vst [vmem:[%s152 + $0x1b8] sm:$0xff] %v263
              $region37: #{up_layer_forward.6} parent=31 // loop_footer
                %s150 = sadd.s32 1, %s146
              $region38: #{up_layer_forward.6} parent=31 // loop_footer_branch
                %145 = sbr.rel target = $region34
              $region39: #{up_layer_forward.6} parent=31 // loop_exit
                _
            $region32: #{up_layer_forward.6} parent=27 // pred_fallthru
              _
            // Predicated region
            $region40: #{up_layer_forward.6} parent=27 // pred_check
              _
            $region41: #{up_layer_forward.6} parent=27 // pred_check_branch
              %266 = sbr.rel target = $region43
            $region42: #{up_layer_forward.6} parent=27 // pred_region
              _
            $region43: #{up_layer_forward.6} parent=27 // pred_fallthru
              _
          $region28: #{up_layer_forward.6} parent=23 // pred_fallthru
            _
          %267 = vnop
        $region24: #{up_layer_forward.6} parent=19 // pred_fallthru
          _
      $region20: #{up_layer_forward.6} parent=5 // pred_fallthru
        _
      %p268 = scmp.le.s32.totalorder 1, %s10
      %p269 = scmp.lt.s32.totalorder %s10, 3
      %p270 = pnand %p268, %p269
      %p271 = pneg %p270
      // Predicated region
      $region44: #{up_layer_forward.6} parent=5 // pred_check
        _
      $region45: #{up_layer_forward.6} parent=5 // pred_check_branch
        %273 = sbr.rel (%p270) target = $region47
      $region46: #{up_layer_forward.6} parent=5 // pred_region
        %s274 = ssub.s32 %s10, 1
        %s275 = sand.u32 %s44, 1
        %s276 = sand.u32 %s44, 1
        %s277 = smul.addr %s276, 448
        %s278 = scalar_lea.vmem [#allocation2], %s277
        // Predicated region
        $region48: #{up_layer_forward.6} parent=46 // pred_check
          %p279 = pneg %p57
        $region49: #{up_layer_forward.6} parent=46 // pred_check_branch
          %281 = sbr.rel (%p279) target = $region51
        $region50: #{up_layer_forward.6} parent=46 // pred_region
          _
        $region51: #{up_layer_forward.6} parent=46 // pred_fallthru
          _
        %p282 = pneg %p31
        %p283 = pneg %p28
        %s284 = sand.u32 %s44, 1
        %s285 = sand.u32 %s44, 1
        %s286 = smul.addr %s285, 448
        %s287 = scalar_lea.vmem [#allocation2], %s286
        %p288 = pneg %p57
        %p289 = pneg %p54
        %p290 = pneg %p83
        %p291 = pneg %p80
        %s292 = smul.u32 4, %s15
        %p293 = scmp.lt.s32.totalorder %s292, 7
        %s294 = scalar_select %p293, %s292, 7
        %s295 = smul.addr %s294, 4
        %s296 = scalar_lea.vmem %s2, %s295
        %p297 = pneg %p109
        %p298 = pneg %p106
        %p299 = scmp.lt.s32.totalorder %s15, 1
        %s300 = scalar_select %p299, %s15, 1
        %s301 = smul.addr %s300, 4
        %s302 = scalar_lea.vmem %s3, %s301
        %s303 = smul.u32 4, %s15
        %s304 = smul.u32 4, %s15
        %p305 = scmp.lt.s32.totalorder %s304, 7
        %s306 = scalar_select %p305, %s304, 7
        %s307 = smul.addr %s306, 4
        %s308 = scalar_lea.vmem %s2, %s307
        %s309 = smul.u32 4, %s15
        %p310 = scmp.lt.s32.totalorder %s15, 1
        %s311 = scalar_select %p310, %s15, 1
        %s312 = smul.addr %s311, 4
        %s313 = scalar_lea.vmem %s3, %s312
        %v314 = vld [vmem:[%s0] sm:$0xf]
        %v315 = vld [vmem:[%s278] sm:$0xff]
        %v316 = vld [vmem:[%s278 + $0x8] sm:$0xff]
        %v317 = vld [vmem:[%s278 + $0x10] sm:$0xff]
        %v318 = vld [vmem:[%s278 + $0x18] sm:$0xff]
        %v319 = vld [vmem:[%s278 + $0x20] sm:$0xff]
        %v320 = vld [vmem:[%s278 + $0x28] sm:$0xff]
        %v321 = vld [vmem:[%s278 + $0x30] sm:$0xff]
        %v322 = vld [vmem:[%s278 + $0x38] sm:$0xff]
        %v323 = vld [vmem:[%s278 + $0x40] sm:$0xff]
        %v324 = vld [vmem:[%s278 + $0x48] sm:$0xff]
        %v325 = vld [vmem:[%s278 + $0x50] sm:$0xff]
        %v326 = vld [vmem:[%s278 + $0x58] sm:$0xff]
        %v327 = vld [vmem:[%s278 + $0x60] sm:$0xff]
        %v328 = vld [vmem:[%s278 + $0x68] sm:$0xff]
        %v329 = vld [vmem:[%s278 + $0x70] sm:$0xff]
        %v330 = vld [vmem:[%s278 + $0x78] sm:$0xff]
        %v331 = vld [vmem:[%s278 + $0x80] sm:$0xff]
        %v332 = vld [vmem:[%s278 + $0x88] sm:$0xff]
        %v333 = vld [vmem:[%s278 + $0x90] sm:$0xff]
        %v334 = vld [vmem:[%s278 + $0x98] sm:$0xff]
        %v335 = vld [vmem:[%s278 + $0xa0] sm:$0xff]
        %v336 = vld [vmem:[%s278 + $0xa8] sm:$0xff]
        %v337 = vld [vmem:[%s278 + $0xb0] sm:$0xff]
        %v338 = vld [vmem:[%s278 + $0xb8] sm:$0xff]
        %v339 = vld [vmem:[%s278 + $0xc0] sm:$0xff]
        %v340 = vld [vmem:[%s278 + $0xc8] sm:$0xff]
        %v341 = vld [vmem:[%s278 + $0xd0] sm:$0xff]
        %v342 = vld [vmem:[%s278 + $0xd8] sm:$0xff]
        %v343 = vld [vmem:[%s278 + $0xe0] sm:$0xff]
        %v344 = vld [vmem:[%s278 + $0xe8] sm:$0xff]
        %v345 = vld [vmem:[%s278 + $0xf0] sm:$0xff]
        %v346 = vld [vmem:[%s278 + $0xf8] sm:$0xff]
        %v347 = vld [vmem:[%s278 + $0x100] sm:$0xff]
        %v348 = vld [vmem:[%s278 + $0x108] sm:$0xff]
        %v349 = vld [vmem:[%s278 + $0x110] sm:$0xff]
        %v350 = vld [vmem:[%s278 + $0x118] sm:$0xff]
        %v351 = vld [vmem:[%s278 + $0x120] sm:$0xff]
        %v352 = vld [vmem:[%s278 + $0x128] sm:$0xff]
        %v353 = vld [vmem:[%s278 + $0x130] sm:$0xff]
        %v354 = vld [vmem:[%s278 + $0x138] sm:$0xff]
        %v355 = vld [vmem:[%s278 + $0x140] sm:$0xff]
        %v356 = vld [vmem:[%s278 + $0x148] sm:$0xff]
        %v357 = vld [vmem:[%s278 + $0x150] sm:$0xff]
        %v358 = vld [vmem:[%s278 + $0x158] sm:$0xff]
        %v359 = vld [vmem:[%s278 + $0x160] sm:$0xff]
        %v360 = vld [vmem:[%s278 + $0x168] sm:$0xff]
        %v361 = vld [vmem:[%s278 + $0x170] sm:$0xff]
        %v362 = vld [vmem:[%s278 + $0x178] sm:$0xff]
        %v363 = vld [vmem:[%s278 + $0x180] sm:$0xff]
        %v364 = vld [vmem:[%s278 + $0x188] sm:$0xff]
        %v365 = vld [vmem:[%s278 + $0x190] sm:$0xff]
        %v366 = vld [vmem:[%s278 + $0x198] sm:$0xff]
        %v367 = vld [vmem:[%s278 + $0x1a0] sm:$0xf]
        %v368 = vld [vmem:[%s278 + $0x1a8] sm:$0xf]
        %v369 = vld [vmem:[%s278 + $0x1b0] sm:$0xf]
        %v370 = vld [vmem:[%s278 + $0x1b8] sm:$0xf]
        %vm371 = vcmask 883712
        %v373 = vsel %vm371, %v314, 0
        %vm375 = vcmask 1043456
        %v377 = vsel %vm375, %v367, 0
        %v380 = vsel %vm375, %v368, 0
        %v383 = vsel %vm375, %v369, 0
        %v386 = vsel %vm375, %v370, 0
        %388 = vmatprep.subr.mxu0 %v316
        %389 = vmatpush1.msra.mxu0 %v315
        %390 = vmatprep.subr.mxu0 %v320
        %391 = vmatpush1.msra.mxu0 %v319
        %392 = vmatprep.subr.mxu0 %v324
        %393 = vmatpush1.msra.mxu0 %v323
        %394 = vmatprep.subr.mxu0 %v328
        %395 = vmatpush1.msra.mxu0 %v327
        %396 = vmatprep.subr.mxu0 %v332
        %397 = vmatpush1.msra.mxu0 %v331
        %398 = vmatprep.subr.mxu0 %v336
        %399 = vmatpush1.msra.mxu0 %v335
        %400 = vmatprep.subr.mxu0 %v340
        %401 = vmatpush1.msra.mxu0 %v339
        %402 = vmatprep.subr.mxu0 %v344
        %403 = vmatpush1.msra.mxu0 %v343
        %404 = vmatprep.subr.mxu0 %v348
        %405 = vmatpush1.msra.mxu0 %v347
        %406 = vmatprep.subr.mxu0 %v352
        %407 = vmatpush1.msra.mxu0 %v351
        %408 = vmatprep.subr.mxu0 %v356
        %409 = vmatpush1.msra.mxu0 %v355
        %410 = vmatprep.subr.mxu0 %v360
        %411 = vmatpush1.msra.mxu0 %v359
        %412 = vmatprep.subr.mxu0 %v364
        %413 = vmatpush1.msra.mxu0 %v363
        %414 = vmatprep.subr.mxu0 %v380
        %415 = vmatpush1.msra.mxu0 %v377
        %416 = vmatprep.subr.mxu0 0.0
        %417 = vmatpush1.msra.mxu0 0.0
        %418 = vmatprep.subr.mxu0 0.0
        %419 = vmatpush1.msra.mxu0 0.0
        %420 = vmatprep.subr.mxu0 0.0
        %421 = vmatpush1.msra.mxu0 0.0
        %422 = vmatprep.subr.mxu0 0.0
        %423 = vmatpush1.msra.mxu0 0.0
        %424 = vmatprep.subr.mxu0 0.0
        %425 = vmatpush1.msra.mxu0 0.0
        %426 = vmatprep.subr.mxu0 0.0
        %427 = vmatpush1.msra.mxu0 0.0
        %428 = vmatprep.subr.mxu0 0.0
        %429 = vmatpush1.msra.mxu0 0.0
        %430 = vmatprep.subr.mxu0 0.0
        %431 = vmatpush1.msra.mxu0 0.0
        %432 = vmatprep.subr.mxu0 0.0
        %433 = vmatpush1.msra.mxu0 0.0
        %434 = vmatprep.subr.mxu0 0.0
        %435 = vmatpush1.msra.mxu0 0.0
        %436 = vmatprep.subr.mxu0 0.0
        %437 = vmatpush1.msra.mxu0 0.0
        %438 = vmatprep.subr.mxu0 0.0
        %439 = vmatpush1.msra.mxu0 0.0
        %440 = vmatprep.subr.mxu0 0.0
        %441 = vmatpush1.msra.mxu0 0.0
        %442 = vmatprep.subr.mxu0 0.0
        %443 = vmatpush1.msra.mxu0 0.0
        %444 = vmatprep.subr.mxu0 0.0
        %445 = vmatpush1.msra.mxu0 0.0
        %446 = vmatprep.subr.mxu0 0.0
        %447 = vmatpush1.msra.mxu0 0.0
        %448 = vmatprep.subr.mxu0 0.0
        %449 = vmatpush1.msra.mxu0 0.0
        %450 = vmatprep.subr.mxu0 0.0
        %451 = vmatpush1.msra.mxu0 0.0
        %452 = vmatprep.mubr.f32.mxu0 0.0
        %453 = vmatmul.mubr.f32.gmra.mrb[0].mxu0 %v373
        %v454 = vpop.f32.mrb[0].mxu0
        %v455 = vadd.f32 0.0, %v454
        %v456 = vpop.f32.mrb[0].mxu0
        %v457 = vadd.f32 0.0, %v456
        %458 = vdwg.mxu0
        %459 = vmatprep.subr.mxu0 %v318
        %460 = vmatpush1.msra.mxu0 %v317
        %461 = vmatprep.subr.mxu0 %v322
        %462 = vmatpush1.msra.mxu0 %v321
        %463 = vmatprep.subr.mxu0 %v326
        %464 = vmatpush1.msra.mxu0 %v325
        %465 = vmatprep.subr.mxu0 %v330
        %466 = vmatpush1.msra.mxu0 %v329
        %467 = vmatprep.subr.mxu0 %v334
        %468 = vmatpush1.msra.mxu0 %v333
        %469 = vmatprep.subr.mxu0 %v338
        %470 = vmatpush1.msra.mxu0 %v337
        %471 = vmatprep.subr.mxu0 %v342
        %472 = vmatpush1.msra.mxu0 %v341
        %473 = vmatprep.subr.mxu0 %v346
        %474 = vmatpush1.msra.mxu0 %v345
        %475 = vmatprep.subr.mxu0 %v350
        %476 = vmatpush1.msra.mxu0 %v349
        %477 = vmatprep.subr.mxu0 %v354
        %478 = vmatpush1.msra.mxu0 %v353
        %479 = vmatprep.subr.mxu0 %v358
        %480 = vmatpush1.msra.mxu0 %v357
        %481 = vmatprep.subr.mxu0 %v362
        %482 = vmatpush1.msra.mxu0 %v361
        %483 = vmatprep.subr.mxu0 %v366
        %484 = vmatpush1.msra.mxu0 %v365
        %485 = vmatprep.subr.mxu0 %v386
        %486 = vmatpush1.msra.mxu0 %v383
        %487 = vmatprep.subr.mxu0 0.0
        %488 = vmatpush1.msra.mxu0 0.0
        %489 = vmatprep.subr.mxu0 0.0
        %490 = vmatpush1.msra.mxu0 0.0
        %491 = vmatprep.subr.mxu0 0.0
        %492 = vmatpush1.msra.mxu0 0.0
        %493 = vmatprep.subr.mxu0 0.0
        %494 = vmatpush1.msra.mxu0 0.0
        %495 = vmatprep.subr.mxu0 0.0
        %496 = vmatpush1.msra.mxu0 0.0
        %497 = vmatprep.subr.mxu0 0.0
        %498 = vmatpush1.msra.mxu0 0.0
        %499 = vmatprep.subr.mxu0 0.0
        %500 = vmatpush1.msra.mxu0 0.0
        %501 = vmatprep.subr.mxu0 0.0
        %502 = vmatpush1.msra.mxu0 0.0
        %503 = vmatprep.subr.mxu0 0.0
        %504 = vmatpush1.msra.mxu0 0.0
        %505 = vmatprep.subr.mxu0 0.0
        %506 = vmatpush1.msra.mxu0 0.0
        %507 = vmatprep.subr.mxu0 0.0
        %508 = vmatpush1.msra.mxu0 0.0
        %509 = vmatprep.subr.mxu0 0.0
        %510 = vmatpush1.msra.mxu0 0.0
        %511 = vmatprep.subr.mxu0 0.0
        %512 = vmatpush1.msra.mxu0 0.0
        %513 = vmatprep.subr.mxu0 0.0
        %514 = vmatpush1.msra.mxu0 0.0
        %515 = vmatprep.subr.mxu0 0.0
        %516 = vmatpush1.msra.mxu0 0.0
        %517 = vmatprep.subr.mxu0 0.0
        %518 = vmatpush1.msra.mxu0 0.0
        %519 = vmatprep.subr.mxu0 0.0
        %520 = vmatpush1.msra.mxu0 0.0
        %521 = vmatprep.subr.mxu0 0.0
        %522 = vmatpush1.msra.mxu0 0.0
        %523 = vmatprep.mubr.f32.mxu0 0.0
        %524 = vmatmul.mubr.f32.gmra.mrb[0].mxu0 %v373
        %v525 = vpop.f32.mrb[0].mxu0
        %v526 = vadd.f32 0.0, %v525
        %v527 = vpop.f32.mrb[0].mxu0
        %v528 = vadd.f32 0.0, %v527
        %529 = vdwg.mxu0
        %v534 = vcombine.low %v455, %v457
        %v535 = vcombine.low %v526, %v528
        %538 = vst [vmem:[%s308] sm:$0xff] %v534
        %539 = vst [vmem:[%s308 + $0x8] sm:$0xff] %v535
        %v540 = vsel %vm375, %v455, 0.0
        %v541 = vsel %vm375, %v457, 0.0
        %v542 = vadd.f32 %v540, %v541
        %v543 = vsel %vm375, %v526, 0.0
        %v544 = vadd.f32 %v542, %v543
        %v545 = vsel %vm375, %v528, 0.0
        %v546 = vadd.f32 %v544, %v545
        %547 = vadd.xlane.f32.xlu0 %v546
        %v548 = vpop.xlane.xlu0 %547
        %v549 = vmul.f32 %v455, %v455
        %v550 = vmul.f32 %v457, %v457
        %v551 = vmul.f32 %v526, %v526
        %v552 = vmul.f32 %v528, %v528
        %v553 = vsel %vm375, %v549, 0.0
        %v554 = vsel %vm375, %v550, 0.0
        %v555 = vadd.f32 %v553, %v554
        %v556 = vsel %vm375, %v551, 0.0
        %v557 = vadd.f32 %v555, %v556
        %v558 = vsel %vm375, %v552, 0.0
        %v559 = vadd.f32 %v557, %v558
        %560 = vadd.xlane.f32.xlu0 %v559
        %v561 = vpop.xlane.xlu0 %560
        %vm562 = vcmask 7168
        %v563 = vsel %vm562, %v548, %v561
        %vm564 = vcmask 11264
        %565 = vst.msk [vmem:[%s313] sm:$0xf] %vm564, %v563
        %s566 = smul.u32 4, %s15
        %p567 = scmp.lt.s32.totalorder %s566, 7
        %s568 = scalar_select %p567, %s566, 7
        %s569 = smul.addr %s568, 4
        %s570 = scalar_lea.vmem %s2, %s569
        %p571 = scmp.lt.s32.totalorder %s15, 1
        %s572 = scalar_select %p571, %s15, 1
        %s573 = smul.addr %s572, 4
        %s574 = scalar_lea.vmem %s3, %s573
        // Predicated region
        $region52: #{up_layer_forward.6} parent=46 // pred_check
          %p575 = pneg %p80
        $region53: #{up_layer_forward.6} parent=46 // pred_check_branch
          %577 = sbr.rel (%p575) target = $region55
        $region54: #{up_layer_forward.6} parent=46 // pred_region
          %s578 = smul.u32 4, %s15
        $region55: #{up_layer_forward.6} parent=46 // pred_fallthru
          _
        // Predicated region
        $region56: #{up_layer_forward.6} parent=46 // pred_check
          %p579 = pneg %p106
        $region57: #{up_layer_forward.6} parent=46 // pred_check_branch
          %581 = sbr.rel (%p579) target = $region59
        $region58: #{up_layer_forward.6} parent=46 // pred_region
          _
        $region59: #{up_layer_forward.6} parent=46 // pred_fallthru
          _
      $region47: #{up_layer_forward.6} parent=5 // pred_fallthru
        _
      %p582 = scmp.le.s32.totalorder 2, %s10
      // Predicated region
      $region60: #{up_layer_forward.6} parent=5 // pred_check
        %p583 = pneg %p582
      $region61: #{up_layer_forward.6} parent=5 // pred_check_branch
        %585 = sbr.rel (%p583) target = $region63
      $region62: #{up_layer_forward.6} parent=5 // pred_region
        %s586 = ssub.s32 %s10, 2
        // Predicated region
        $region64: #{up_layer_forward.6} parent=62 // pred_check
          %p587 = pneg %p86
        $region65: #{up_layer_forward.6} parent=62 // pred_check_branch
          %589 = sbr.rel (%p587) target = $region67
        $region66: #{up_layer_forward.6} parent=62 // pred_region
          %s590 = smul.u32 4, %s16
          %p591 = scmp.lt.s32.totalorder %s590, 7
          %s592 = scalar_select %p591, %s590, 7
          %s593 = smul.addr %s592, 4
          %s594 = scalar_lea.vmem %s2, %s593
        $region67: #{up_layer_forward.6} parent=62 // pred_fallthru
          _
        // Predicated region
        $region68: #{up_layer_forward.6} parent=62 // pred_check
          %p595 = pneg %p112
        $region69: #{up_layer_forward.6} parent=62 // pred_check_branch
          %597 = sbr.rel (%p595) target = $region71
        $region70: #{up_layer_forward.6} parent=62 // pred_region
          %p598 = scmp.lt.s32.totalorder %s16, 1
          %s599 = scalar_select %p598, %s16, 1
          %s600 = smul.addr %s599, 4
          %s601 = scalar_lea.vmem %s3, %s600
        $region71: #{up_layer_forward.6} parent=62 // pred_fallthru
          _
      $region63: #{up_layer_forward.6} parent=5 // pred_fallthru
        _
    $region6: #{up_layer_forward.6} parent=1 // loop_footer
      %s14 = sadd.s32 1, %s10
    $region7: #{up_layer_forward.6} parent=1 // loop_footer_branch
      %9 = sbr.rel target = $region3
    $region8: #{up_layer_forward.6} parent=1 // loop_exit
      _

// kernel: up_layer_forward.7
$region0: #{up_layer_forward.7}
  #allocation0 [shape = 'u32[]', space=smem, size = 0x4, offset = 0x4, fixed_abs, tag = 'smem constant byte address 0x4 - core index']
  #allocation1 [shape = 'u32[144,128]{1,0:T(1,128)}', space=vmem, size = 0x12000, scoped, tag = 'internal scratch']
  #allocation2 [shape = 'f32[1,1]{1,0:T(1,128)S(1)}', space=vmem, size = 0x200, scoped, tag = 'scoped memory for up_layer_forward.7']
  %s0 = inlined_call_operand.vmem [shape: f32[4,1024], index: 0, kind: input, shape index: {}]
  %s1 = inlined_call_operand.vmem [shape: f32[4,1024], index: 1, kind: input, shape index: {}]
  %s2 = inlined_call_operand.vmem [shape: f32[4,1], index: 2, kind: input, shape index: {}]
  %s3 = inlined_call_operand.vmem [shape: f32[4,1], index: 3, kind: input, shape index: {}]
  %s4 = inlined_call_operand.<no memory space> [shape: f32[1,1], index: 4, kind: input, shape index: {}]
  %s5 = inlined_call_operand.vmem [shape: f32[4,1024], index: 5, kind: output, shape index: {}]
  %s6 = sld [smem:[#allocation0]]
  $region53: #{up_layer_forward.7} parent=0
    _
  %s8 = ssub.s32 1, %s6
  %s9 = scalar_select 0, %s8, %s6
  %v10 = vstv %s4
  %11 = vst [vmem:[#allocation2] sm:$0x1] %v10
  loop: start=0, step=1, limit=4
  $region2: #{up_layer_forward.7} parent=0 // loop_pre_header
    _
  $region3: #{up_layer_forward.7} parent=0 // loop_header
    %s13 = sphi 0, %s17
    %p14 = scmp.ge.s32.totalorder %s13, 4
    %s23 = sphi 0, %s25
    %s26 = sphi 0, %s23
    %s27 = sphi 0, %s26
    %s43 = sphi 0, %s27
    %s49 = sphi 0, %s51
    %s52 = sphi 0, %s49
    %s53 = sphi 0, %s52
    %s69 = sphi 0, %s53
    %s73 = sphi 0, %s73
    %s75 = sphi 0, %s73
    %s76 = sphi 0, %s75
    %s90 = sphi 0, %s76
    %s94 = sphi 0, %s94
    %s96 = sphi 0, %s94
    %s97 = sphi 0, %s96
    %s111 = sphi 0, %s97
    %s115 = sphi 0, %s115
    %s117 = sphi 0, %s115
    %s118 = sphi 0, %s117
    %s132 = sphi 0, %s118
    %s138 = sphi 0, %s140
    %s141 = sphi 0, %s138
    %s142 = sphi 0, %s141
    %s158 = sphi 0, %s142
  $region4: #{up_layer_forward.7} parent=0 // loop_header_branch
    %16 = sbr.rel (%p14) target = $region8
  $region5: #{up_layer_forward.7} parent=0 // loop_body
    %s18 = ssub.s32 %s13, 1
    %s19 = ssub.s32 %s13, 2
    %s20 = sadd.s32 %s13, 1
    %s21 = ssub.s32 %s13, %s20
    %p22 = scmp.eq.s32.totalorder %s21, 0
    %s24 = sadd.s32 %s23, 1
    %s25 = scalar_select %p22, %s23, %s24
    %p28 = pneg %p22
    %p29 = scmp.eq.s32.totalorder %s13, 1
    %p30 = por %p28, %p29
    %p31 = scmp.ne.s32.totalorder %s23, %s26
    %p32 = scmp.eq.s32.totalorder %s13, 0
    %p33 = por %p31, %p32
    %p34 = scmp.ne.s32.totalorder %s23, %s26
    %p35 = scmp.eq.s32.totalorder %s18, 1
    %p36 = por %p34, %p35
    %p37 = scmp.ne.s32.totalorder %s26, %s27
    %p38 = scmp.eq.s32.totalorder %s18, 0
    %p39 = por %p37, %p38
    %p40 = scmp.ne.s32.totalorder %s26, %s27
    %p41 = scmp.eq.s32.totalorder %s19, 1
    %p42 = por %p40, %p41
    %p44 = scmp.ne.s32.totalorder %s27, %s43
    %p45 = scmp.eq.s32.totalorder %s19, 0
    %p46 = por %p44, %p45
    %s47 = ssub.s32 %s13, %s20
    %p48 = scmp.eq.s32.totalorder %s47, 0
    %s50 = sadd.s32 %s49, 1
    %s51 = scalar_select %p48, %s49, %s50
    %p54 = pneg %p48
    %p55 = scmp.eq.s32.totalorder %s13, 1
    %p56 = por %p54, %p55
    %p57 = scmp.ne.s32.totalorder %s49, %s52
    %p58 = scmp.eq.s32.totalorder %s13, 0
    %p59 = por %p57, %p58
    %p60 = scmp.ne.s32.totalorder %s49, %s52
    %p61 = scmp.eq.s32.totalorder %s18, 1
    %p62 = por %p60, %p61
    %p63 = scmp.ne.s32.totalorder %s52, %s53
    %p64 = scmp.eq.s32.totalorder %s18, 0
    %p65 = por %p63, %p64
    %p66 = scmp.ne.s32.totalorder %s52, %s53
    %p67 = scmp.eq.s32.totalorder %s19, 1
    %p68 = por %p66, %p67
    %p70 = scmp.ne.s32.totalorder %s53, %s69
    %p71 = scmp.eq.s32.totalorder %s19, 0
    %p72 = por %p70, %p71
    %s74 = sadd.s32 %s73, 1
    %p77 = scmp.eq.s32.totalorder %s13, 1
    %p78 = scmp.ne.s32.totalorder %s73, %s75
    %p79 = scmp.eq.s32.totalorder %s13, 0
    %p80 = por %p78, %p79
    %p81 = scmp.ne.s32.totalorder %s73, %s75
    %p82 = scmp.eq.s32.totalorder %s18, 1
    %p83 = por %p81, %p82
    %p84 = scmp.ne.s32.totalorder %s75, %s76
    %p85 = scmp.eq.s32.totalorder %s18, 0
    %p86 = por %p84, %p85
    %p87 = scmp.ne.s32.totalorder %s75, %s76
    %p88 = scmp.eq.s32.totalorder %s19, 1
    %p89 = por %p87, %p88
    %p91 = scmp.ne.s32.totalorder %s76, %s90
    %p92 = scmp.eq.s32.totalorder %s19, 0
    %p93 = por %p91, %p92
    %s95 = sadd.s32 %s94, 1
    %p98 = scmp.eq.s32.totalorder %s13, 1
    %p99 = scmp.ne.s32.totalorder %s94, %s96
    %p100 = scmp.eq.s32.totalorder %s13, 0
    %p101 = por %p99, %p100
    %p102 = scmp.ne.s32.totalorder %s94, %s96
    %p103 = scmp.eq.s32.totalorder %s18, 1
    %p104 = por %p102, %p103
    %p105 = scmp.ne.s32.totalorder %s96, %s97
    %p106 = scmp.eq.s32.totalorder %s18, 0
    %p107 = por %p105, %p106
    %p108 = scmp.ne.s32.totalorder %s96, %s97
    %p109 = scmp.eq.s32.totalorder %s19, 1
    %p110 = por %p108, %p109
    %p112 = scmp.ne.s32.totalorder %s97, %s111
    %p113 = scmp.eq.s32.totalorder %s19, 0
    %p114 = por %p112, %p113
    %s116 = sadd.s32 %s115, 1
    %p119 = scmp.eq.s32.totalorder %s13, 1
    %p120 = scmp.ne.s32.totalorder %s115, %s117
    %p121 = scmp.eq.s32.totalorder %s13, 0
    %p122 = por %p120, %p121
    %p123 = scmp.ne.s32.totalorder %s115, %s117
    %p124 = scmp.eq.s32.totalorder %s18, 1
    %p125 = por %p123, %p124
    %p126 = scmp.ne.s32.totalorder %s117, %s118
    %p127 = scmp.eq.s32.totalorder %s18, 0
    %p128 = por %p126, %p127
    %p129 = scmp.ne.s32.totalorder %s117, %s118
    %p130 = scmp.eq.s32.totalorder %s19, 1
    %p131 = por %p129, %p130
    %p133 = scmp.ne.s32.totalorder %s118, %s132
    %p134 = scmp.eq.s32.totalorder %s19, 0
    %p135 = por %p133, %p134
    %s136 = ssub.s32 %s13, %s20
    %p137 = scmp.eq.s32.totalorder %s136, 0
    %s139 = sadd.s32 %s138, 1
    %s140 = scalar_select %p137, %s138, %s139
    %p143 = pneg %p137
    %p144 = scmp.eq.s32.totalorder %s13, 1
    %p145 = por %p143, %p144
    %p146 = scmp.ne.s32.totalorder %s138, %s141
    %p147 = scmp.eq.s32.totalorder %s13, 0
    %p148 = por %p146, %p147
    %p149 = scmp.ne.s32.totalorder %s138, %s141
    %p150 = scmp.eq.s32.totalorder %s18, 1
    %p151 = por %p149, %p150
    %p152 = scmp.ne.s32.totalorder %s141, %s142
    %p153 = scmp.eq.s32.totalorder %s18, 0
    %p154 = por %p152, %p153
    %p155 = scmp.ne.s32.totalorder %s141, %s142
    %p156 = scmp.eq.s32.totalorder %s19, 1
    %p157 = por %p155, %p156
    %p159 = scmp.ne.s32.totalorder %s142, %s158
    %p160 = scmp.eq.s32.totalorder %s19, 0
    %p161 = por %p159, %p160
    %p162 = scmp.le.s32.totalorder 1, %s13
    %p163 = scmp.lt.s32.totalorder %s13, 3
    %p164 = pnand %p162, %p163
    %p165 = pneg %p164
    // Predicated region
    $region9: #{up_layer_forward.7} parent=5 // pred_check
      _
    $region10: #{up_layer_forward.7} parent=5 // pred_check_branch
      %167 = sbr.rel (%p164) target = $region12
    $region11: #{up_layer_forward.7} parent=5 // pred_region
      %s168 = ssub.s32 %s13, 1
      // Predicated region
      $region13: #{up_layer_forward.7} parent=11 // pred_check
        %p169 = pneg %p86
      $region14: #{up_layer_forward.7} parent=11 // pred_check_branch
        %171 = sbr.rel (%p169) target = $region16
      $region15: #{up_layer_forward.7} parent=11 // pred_region
        _
      $region16: #{up_layer_forward.7} parent=11 // pred_fallthru
        _
      // Predicated region
      $region17: #{up_layer_forward.7} parent=11 // pred_check
        %p172 = pneg %p107
      $region18: #{up_layer_forward.7} parent=11 // pred_check_branch
        %174 = sbr.rel (%p172) target = $region20
      $region19: #{up_layer_forward.7} parent=11 // pred_region
        _
      $region20: #{up_layer_forward.7} parent=11 // pred_fallthru
        _
      // Predicated region
      $region21: #{up_layer_forward.7} parent=11 // pred_check
        %p175 = pneg %p128
      $region22: #{up_layer_forward.7} parent=11 // pred_check_branch
        %177 = sbr.rel (%p175) target = $region24
      $region23: #{up_layer_forward.7} parent=11 // pred_region
        _
      $region24: #{up_layer_forward.7} parent=11 // pred_fallthru
        _
    $region12: #{up_layer_forward.7} parent=5 // pred_fallthru
      _
    %p178 = scmp.lt.s32.totalorder %s13, 2
    // Predicated region
    $region25: #{up_layer_forward.7} parent=5 // pred_check
      %p179 = pneg %p178
    $region26: #{up_layer_forward.7} parent=5 // pred_check_branch
      %181 = sbr.rel (%p179) target = $region28
    $region27: #{up_layer_forward.7} parent=5 // pred_region
      // Predicated region
      $region29: #{up_layer_forward.7} parent=27 // pred_check
        %p182 = pneg %p33
      $region30: #{up_layer_forward.7} parent=27 // pred_check_branch
        %184 = sbr.rel (%p182) target = $region32
      $region31: #{up_layer_forward.7} parent=27 // pred_region
        %s185 = smul.u32 4, %s13
        %p186 = scmp.lt.s32.totalorder %s185, 7
        %s187 = scalar_select %p186, %s185, 7
        %s188 = smul.addr %s187, 4
        %s189 = scalar_lea.vmem %s0, %s188
        %s190 = smul.u32 4, %s13
      $region32: #{up_layer_forward.7} parent=27 // pred_fallthru
        _
      // Predicated region
      $region33: #{up_layer_forward.7} parent=27 // pred_check
        %p191 = pneg %p59
      $region34: #{up_layer_forward.7} parent=27 // pred_check_branch
        %193 = sbr.rel (%p191) target = $region36
      $region35: #{up_layer_forward.7} parent=27 // pred_region
        %s194 = smul.u32 4, %s13
        %p195 = scmp.lt.s32.totalorder %s194, 7
        %s196 = scalar_select %p195, %s194, 7
        %s197 = smul.addr %s196, 4
        %s198 = scalar_lea.vmem %s1, %s197
        %s199 = smul.u32 4, %s13
      $region36: #{up_layer_forward.7} parent=27 // pred_fallthru
        _
    $region28: #{up_layer_forward.7} parent=5 // pred_fallthru
      _
    %p200 = scmp.le.s32.totalorder 1, %s13
    %p201 = scmp.lt.s32.totalorder %s13, 3
    %p202 = pnand %p200, %p201
    %p203 = pneg %p202
    // Predicated region
    $region37: #{up_layer_forward.7} parent=5 // pred_check
      _
    $region38: #{up_layer_forward.7} parent=5 // pred_check_branch
      %205 = sbr.rel (%p202) target = $region40
    $region39: #{up_layer_forward.7} parent=5 // pred_region
      %s206 = ssub.s32 %s13, 1
      %s207 = smul.u32 4, %s18
      %p208 = scmp.lt.s32.totalorder %s207, 7
      %s209 = scalar_select %p208, %s207, 7
      %s210 = smul.addr %s209, 4
      %s211 = scalar_lea.vmem %s0, %s210
      %p212 = pneg %p39
      %p213 = pneg %p36
      %s214 = smul.u32 4, %s18
      %p215 = scmp.lt.s32.totalorder %s214, 7
      %s216 = scalar_select %p215, %s214, 7
      %s217 = smul.addr %s216, 4
      %s218 = scalar_lea.vmem %s1, %s217
      %p219 = pneg %p65
      %p220 = pneg %p62
      %p221 = pneg %p86
      %p222 = pneg %p83
      %p223 = pneg %p107
      %p224 = pneg %p104
      %p225 = pneg %p128
      %p226 = pneg %p125
      %p227 = pneg %p154
      %p228 = pneg %p151
      %s229 = smul.u32 4, %s18
      %p230 = scmp.lt.s32.totalorder %s229, 7
      %s231 = scalar_select %p230, %s229, 7
      %s232 = smul.addr %s231, 4
      %s233 = scalar_lea.vmem %s5, %s232
      %s234 = smul.u32 4, %s18
      %p235 = scmp.lt.s32.totalorder %s234, 7
      %s236 = scalar_select %p235, %s234, 7
      %s237 = smul.addr %s236, 4
      %s238 = scalar_lea.vmem %s0, %s237
      %s239 = smul.u32 4, %s18
      %s240 = smul.u32 4, %s18
      %p241 = scmp.lt.s32.totalorder %s240, 7
      %s242 = scalar_select %p241, %s240, 7
      %s243 = smul.addr %s242, 4
      %s244 = scalar_lea.vmem %s1, %s243
      %s245 = smul.u32 4, %s18
      %s246 = smul.u32 4, %s18
      %p247 = scmp.lt.s32.totalorder %s246, 7
      %s248 = scalar_select %p247, %s246, 7
      %s249 = smul.addr %s248, 4
      %s250 = scalar_lea.vmem %s5, %s249
      %s251 = smul.u32 4, %s18
      %v252 = vld [vmem:[%s238] sm:$0xff]
      %v253 = vld [vmem:[%s238 + $0x8] sm:$0xff]
      %v254 = vld [vmem:[%s2] sm:$0xf]
      %256 = vset.pattern.permute.xlu0 0
      %257 = vperm.xlu0 %256, %v254
      %v258 = vpop.permute.xlu0 %257
      %v260 = vunpack.c.l.s4 839922192
      %v261 = vunpack.c.0.s8 %v260
      %v262 = vlaneseq
      %v263 = vshrl.u32 %v262, 7
      %v264 = vsub.s32 %v261, %v263
      %v265 = vrot.slane %v258, %v264
      %v267 = vmul.f32 %v252, %v265
      %v268 = vmul.f32 %v253, %v265
      %v269 = vld [vmem:[%s3] sm:$0xf]
      %271 = vset.pattern.permute.xlu0 0
      %272 = vperm.xlu0 %271, %v269
      %v273 = vpop.permute.xlu0 %272
      %v275 = vunpack.c.l.s4 839922192
      %v276 = vunpack.c.0.s8 %v275
      %v277 = vlaneseq
      %v278 = vshrl.u32 %v277, 7
      %v279 = vsub.s32 %v276, %v278
      %v280 = vrot.slane %v273, %v279
      %v282 = vadd.f32 %v267, %v280
      %v283 = vadd.f32 %v268, %v280
      %v284 = vld [vmem:[#allocation2] sm:$0x1]
      %s285 = vtos %v284
      %vm286 = vcmp.gt.f32.partialorder %v282, 0.0
      %vm287 = vcmp.gt.f32.partialorder %v283, 0.0
      %v288 = vstv %s285
      %v289 = vmul.f32 %v288, %v282
      %v290 = vmul.f32 %v288, %v283
      %v291 = vsel %vm286, %v282, %v289
      %v292 = vsel %vm287, %v283, %v290
      %v293 = vld [vmem:[%s244] sm:$0xff]
      %v294 = vld [vmem:[%s244 + $0x8] sm:$0xff]
      %v295 = vadd.f32 %v291, %v293
      %v296 = vadd.f32 %v292, %v294
      %297 = vst [vmem:[%s250] sm:$0xff] %v295
      %298 = vst [vmem:[%s250 + $0x8] sm:$0xff] %v296
      %s299 = smul.u32 4, %s18
      %p300 = scmp.lt.s32.totalorder %s299, 7
      %s301 = scalar_select %p300, %s299, 7
      %s302 = smul.addr %s301, 4
      %s303 = scalar_lea.vmem %s5, %s302
      // Predicated region
      $region41: #{up_layer_forward.7} parent=39 // pred_check
        %p304 = pneg %p151
      $region42: #{up_layer_forward.7} parent=39 // pred_check_branch
        %306 = sbr.rel (%p304) target = $region44
      $region43: #{up_layer_forward.7} parent=39 // pred_region
        %s307 = smul.u32 4, %s18
      $region44: #{up_layer_forward.7} parent=39 // pred_fallthru
        _
    $region40: #{up_layer_forward.7} parent=5 // pred_fallthru
      _
    %p308 = scmp.le.s32.totalorder 2, %s13
    // Predicated region
    $region45: #{up_layer_forward.7} parent=5 // pred_check
      %p309 = pneg %p308
    $region46: #{up_layer_forward.7} parent=5 // pred_check_branch
      %311 = sbr.rel (%p309) target = $region48
    $region47: #{up_layer_forward.7} parent=5 // pred_region
      %s312 = ssub.s32 %s13, 2
      // Predicated region
      $region49: #{up_layer_forward.7} parent=47 // pred_check
        %p313 = pneg %p157
      $region50: #{up_layer_forward.7} parent=47 // pred_check_branch
        %315 = sbr.rel (%p313) target = $region52
      $region51: #{up_layer_forward.7} parent=47 // pred_region
        %s316 = smul.u32 4, %s19
        %p317 = scmp.lt.s32.totalorder %s316, 7
        %s318 = scalar_select %p317, %s316, 7
        %s319 = smul.addr %s318, 4
        %s320 = scalar_lea.vmem %s5, %s319
      $region52: #{up_layer_forward.7} parent=47 // pred_fallthru
        _
    $region48: #{up_layer_forward.7} parent=5 // pred_fallthru
      _
  $region6: #{up_layer_forward.7} parent=0 // loop_footer
    %s17 = sadd.s32 1, %s13
  $region7: #{up_layer_forward.7} parent=0 // loop_footer_branch
    %12 = sbr.rel target = $region3
  $region8: #{up_layer_forward.7} parent=0 // loop_exit
    _

</llo_original>
